<compile_context>
chip_gen: v5e
topology: v5e:2x2
jax: 0.10.0
libtpu: 0.0.40
codegen_flags: <defaults>
</compile_context>

<pallas_src>
import functools

import jax
import jax.numpy as jnp
from jax.experimental import pallas as pl
from jax.experimental.pallas import tpu as pltpu

_LOFF = 128  # lane-aligned offset of the valid region inside the padded scratch


# ----------------------------------------------------------------------------
# Fused kernel: one grid step = (one sub-discriminator, one batch item).
# Runs all conv layers back to back; intermediates live in VMEM.
# ----------------------------------------------------------------------------
def _fused_disc_kernel(*refs, T, pmax, layer_dims, slopes):
    n = len(layer_dims)
    x_ref = refs[0]                      # (1, Cin0, T) f32
    w_refs = refs[1:1 + n]               # (1, Cout_i, K_i*Cin_i + 1) bf16 (bias = last col)
    out_refs = refs[1 + n:1 + 2 * n]     # (1, 1, Cout_i, T) f32 feature maps
    pad_ref = refs[1 + 2 * n]            # (Cmax, LOFF + T + 128) f32 padded staging
    patch_ref = refs[2 + 2 * n]          # (patch_rows, T) f32 im2col patch

    # Zero only the conv halo columns; the middle of the scratch is always
    # overwritten (for the rows read) before being used, every grid step.
    zeros_halo = jnp.zeros((pad_ref.shape[0], pmax), jnp.float32)
    pad_ref[:, _LOFF - pmax:_LOFF] = zeros_halo
    pad_ref[:, _LOFF + T:_LOFF + T + pmax] = zeros_halo

    h = x_ref[0].astype(jnp.float32)     # (Cin0, T)
    for i, (Cout, Cin, K) in enumerate(layer_dims):
        P = (K - 1) // 2                 # 'same' padding of this layer
        # Stage the layer input into the padded scratch: lane-aligned dense store.
        pad_ref[0:Cin, _LOFF:_LOFF + T] = h
        # im2col: K shifted copies -> patch rows [k*Cin, (k+1)*Cin).
        for k in range(K):
            off = _LOFF - P + k
            patch_ref[k * Cin:(k + 1) * Cin, :] = pad_ref[0:Cin, off:off + T]
        # Constant-1 row so the bias column of the packed weight folds into the matmul.
        patch_ref[K * Cin:K * Cin + 1, :] = jnp.ones((1, T), jnp.float32)
        # Single MXU matmul: (Cout, K*Cin+1) x (K*Cin+1, T), bf16 operands, f32 acc.
        w = w_refs[i][0]                                     # (Cout, K*Cin+1) bf16
        patch = patch_ref[0:K * Cin + 1, :].astype(jnp.bfloat16)
        acc = jnp.dot(w, patch, preferred_element_type=jnp.float32)
        if slopes[i] is not None:                            # LeakyReLU
            acc = jnp.where(acc >= 0.0, acc, acc * slopes[i])
        out_refs[i][0, 0] = acc.astype(out_refs[i].dtype)    # lane-dense (Cout, T) store
        h = acc


def fused_discriminator_forward(x, layers):
    """x: (Btot, Cin0, T) f32.  layers: list of (w_stacked, (Cout,Cin,K), slope)
    with w_stacked: (S, Cout, K*Cin+1) bf16 (bias folded into last column).

    Returns one (S, Btot, Cout_i, T) f32 activation array per layer."""
    Btot, Cin0, T = x.shape
    S = layers[0][0].shape[0]
    dims = tuple(l[1] for l in layers)
    slopes = tuple(l[2] for l in layers)
    assert dims[0][1] == Cin0

    pmax = max((K - 1) // 2 for (_, _, K) in dims)
    cmax = max(max(Cout, Cin) for (Cout, Cin, _) in dims)
    kcmax = max(K * Cin for (_, Cin, K) in dims)
    patch_rows = ((kcmax + 1 + 7) // 8) * 8

    kernel = functools.partial(_fused_disc_kernel, T=T, pmax=pmax,
                               layer_dims=dims, slopes=slopes)

    in_specs = [pl.BlockSpec((1, Cin0, T), lambda s, b: (b, 0, 0))]
    operands = [x.astype(jnp.float32)]
    for (wstk, (Cout, Cin, K), _) in layers:
        in_specs.append(pl.BlockSpec((1, Cout, K * Cin + 1), lambda s, b: (s, 0, 0)))
        operands.append(wstk)

    out_shape = tuple(jax.ShapeDtypeStruct((S, Btot, Cout, T), jnp.float32)
                      for (Cout, _, _) in dims)
    out_specs = tuple(pl.BlockSpec((1, 1, Cout, T), lambda s, b: (s, b, 0, 0))
                      for (Cout, _, _) in dims)

    return pl.pallas_call(
        kernel,
        out_shape=out_shape,
        grid=(S, Btot),
        in_specs=in_specs,
        out_specs=out_specs,
        scratch_shapes=[pltpu.VMEM((cmax, _LOFF + T + 128), jnp.float32),
                        pltpu.VMEM((patch_rows, T), jnp.float32)],
        compiler_params=pltpu.CompilerParams(
            dimension_semantics=("parallel", "parallel")),
    )(*operands)


# ----------------------------------------------------------------------------
# Synthetic sub-discriminator (Conv1d stack with deterministic weights)
# ----------------------------------------------------------------------------
def _pack_conv(w, b):
    """PyTorch Conv1d weight (Cout,Cin,K), bias (Cout,) -> (Cout, K*Cin+1) with
    column layout [k*Cin + ci] and the bias in the last column."""
    Cout, Cin, K = w.shape
    w2d = jnp.transpose(w, (0, 2, 1)).reshape(Cout, K * Cin)
    return jnp.concatenate([w2d, b.reshape(Cout, 1)], axis=1)


class SubDiscriminator:
    def __init__(self, key, channels=8, in_channels=1, slope=0.1):
        k1, k2, k3, k4, k5, k6 = jax.random.split(key, 6)
        s = 0.05
        w1 = s * jax.random.normal(k1, (channels, in_channels, 15), jnp.float32)
        b1 = s * jax.random.normal(k2, (channels,), jnp.float32)
        w2 = s * jax.random.normal(k3, (channels, channels, 15), jnp.float32)
        b2 = s * jax.random.normal(k4, (channels,), jnp.float32)
        w3 = s * jax.random.normal(k5, (1, channels, 3), jnp.float32)
        b3 = s * jax.random.normal(k6, (1,), jnp.float32)
        self.params = [(w1, b1, slope), (w2, b2, slope), (w3, b3, None)]
        self.packed = [(_pack_conv(w, b).astype(jnp.bfloat16), w.shape, sl)
                       for (w, b, sl) in self.params]
        self.arch = tuple((w.shape, sl) for (w, _, sl) in self.params)

    def __call__(self, x):
        layers = [(p[None], dims, sl) for (p, dims, sl) in self.packed]
        acts = fused_discriminator_forward(x, layers)
        feats = [a[0] for a in acts]
        return feats[-1], feats


# ----------------------------------------------------------------------------
# BaseDiscriminator: forward semantics mirror the PyTorch module
# ----------------------------------------------------------------------------
class BaseDiscriminator:
    def __init__(self):
        self.sub_discriminators = []        # nn.ModuleList()
        self.pooling = lambda x: x          # nn.Identity()
        self._pooling_is_identity = True

    def forward(self, wave_true, wave_fake_detached, wave_fake, detach=True,
                **kwargs):
        wave_fake_consistent = wave_fake_detached if detach else wave_fake
        subs = list(self.sub_discriminators)
        if not subs:
            return [], [], [], []

        fusable = (self._pooling_is_identity
                   and all(s.arch == subs[0].arch for s in subs))
        if fusable:
            # Fused path: exact because pooling is Identity, so every
            # sub-discriminator sees the same true / fake waves.
            B = wave_true.shape[0]
            x_all = jnp.concatenate([wave_true, wave_fake_consistent], axis=0)
            layers = []
            for li in range(len(subs[0].packed)):
                wstk = jnp.stack([s.packed[li][0] for s in subs], axis=0)
                layers.append((wstk, subs[0].packed[li][1], subs[0].packed[li][2]))
            acts = fused_discriminator_forward(x_all, layers)
            true_outputs, fake_outputs, true_features, fake_features = [], [], [], []
            for si in range(len(subs)):
                t_feats = [a[si, :B] for a in acts]
                f_feats = [a[si, B:] for a in acts]
                true_outputs.append(t_feats[-1])
                true_features.append(t_feats)
                fake_outputs.append(f_feats[-1])
                fake_features.append(f_feats)
            return true_outputs, fake_outputs, true_features, fake_features

        # Reference (unfused) path: mirrors the PyTorch loop exactly.
        true_outputs, fake_outputs, true_features, fake_features = [], [], [], []
        for sub_discriminator in subs:
            true_output, true_feature_map = sub_discriminator(wave_true)
            fake_output, fake_feature_map = sub_discriminator(wave_fake_consistent)
            true_outputs.append(true_output)
            true_features.append(true_feature_map)
            fake_outputs.append(fake_output)
            fake_features.append(fake_feature_map)
            wave_true = self.pooling(wave_true)
            wave_fake_consistent = self.pooling(wave_fake_consistent)
        return true_outputs, fake_outputs, true_features, fake_features


# ----------------------------------------------------------------------------
# Pure-JAX reference for correctness checking
# ----------------------------------------------------------------------------
def _ref_sub_forward(x, params):
    feats = []
    h = x
    for (w, b, slope) in params:
        P = (w.shape[2] - 1) // 2
        h = jax.lax.conv_general_dilated(
            h, w, window_strides=(1,), padding=[(P, P)],
            dimension_numbers=("NCH", "OIH", "NCH"))
        h = h + b[None, :, None]
        if slope is not None:
            h = jnp.where(h >= 0, h, slope * h)
        feats.append(h)
    return feats[-1], feats


if __name__ == "__main__":
    key = jax.random.PRNGKey(0)
    k_true, k_fake, k_d1, k_d2 = jax.random.split(key, 4)

    B, C, T = 2, 1, 256
    wave_true = jax.random.normal(k_true, (B, C, T), jnp.float32)
    wave_fake = jax.random.normal(k_fake, (B, C, T), jnp.float32)
    wave_fake_detached = jax.lax.stop_gradient(wave_fake)   # torch .detach()

    disc = BaseDiscriminator()
    disc.sub_discriminators.append(SubDiscriminator(k_d1))
    disc.sub_discriminators.append(SubDiscriminator(k_d2))

    # Single jit trace: one fused pallas_call + trivial glue dispatch as one program.
    fwd = jax.jit(lambda wt, wfd, wf: disc.forward(wt, wfd, wf, detach=True))
    true_outs, fake_outs, true_feats, fake_feats = fwd(
        wave_true, wave_fake_detached, wave_fake)

    for tree in (true_outs, fake_outs, true_feats, fake_feats):
        jax.tree_util.tree_map(jax.block_until_ready, tree)

    # Structural checks (match the PyTorch forward's list-of-lists contract).
    assert len(true_outs) == 2 and len(fake_outs) == 2
    assert true_outs[0].shape == (B, 1, T)
    assert len(true_feats[0]) == 3
    assert true_feats[0][0].shape == (B, 8, T)
    assert true_feats[0][2].shape == (B, 1, T)

    # Numerical check against a pure-JAX conv reference (bf16 MXU operands,
    # f32 accumulation -> generous but tight-enough tolerance).
    max_err = 0.0
    for si, sub in enumerate(disc.sub_discriminators):
        _, rt_feats = _ref_sub_forward(wave_true, sub.params)
        _, rf_feats = _ref_sub_forward(wave_fake_detached, sub.params)
        for got, ref in zip(list(true_feats[si]) + list(fake_feats[si]),
                            rt_feats + rf_feats):
            max_err = max(max_err, float(jnp.max(jnp.abs(got - ref))))
    assert max_err < 1e-2, f"numerical mismatch vs reference: max_err={max_err}"

    print("KERNEL_OK")
</pallas_src>

<mosaic_0001>
module attributes {stable_mosaic.version = 11 : i64} {
  func.func @_fused_disc_kernel(%arg0: i32, %arg1: i32, %arg2: memref<1x1x256xf32, #tpu.memory_space<vmem>>, %arg3: memref<1x8x16xbf16, #tpu.memory_space<vmem>>, %arg4: memref<1x8x121xbf16, #tpu.memory_space<vmem>>, %arg5: memref<1x1x25xbf16, #tpu.memory_space<vmem>>, %arg6: memref<1x1x8x256xf32, #tpu.memory_space<vmem>>, %arg7: memref<1x1x8x256xf32, #tpu.memory_space<vmem>>, %arg8: memref<1x1x1x256xf32, #tpu.memory_space<vmem>>, %arg9: memref<8x512xf32, #tpu.memory_space<vmem>>, %arg10: memref<128x256xf32, #tpu.memory_space<vmem>>) attributes {dimension_semantics = [#tpu.dimension_semantics<parallel>, #tpu.dimension_semantics<parallel>], iteration_bounds = array<i64: 2, 4>, scalar_prefetch = 0 : i64, scratch_operands = 2 : i64, tpu.core_type = #tpu.core_type<tc>, window_params = [{transform_indices = @transform_0, window_bounds = array<i64: 1, 1, 256>}, {transform_indices = @transform_1, window_bounds = array<i64: 1, 8, 16>}, {transform_indices = @transform_2, window_bounds = array<i64: 1, 8, 121>}, {transform_indices = @transform_3, window_bounds = array<i64: 1, 1, 25>}, {transform_indices = @transform_4, window_bounds = array<i64: 1, 1, 8, 256>}, {transform_indices = @transform_5, window_bounds = array<i64: 1, 1, 8, 256>}, {transform_indices = @transform_6, window_bounds = array<i64: 1, 1, 1, 256>}]} {
    %cst = arith.constant 0.000000e+00 : f32
    %0 = vector.broadcast %cst : f32 to vector<8x7xf32>
    %c0 = arith.constant 0 : index
    %c121 = arith.constant 121 : index
    %1 = vector.load %arg9[%c0, %c121] : memref<8x512xf32, #tpu.memory_space<vmem>>, vector<8x7xf32>
    tpu.vector_store %arg9[%c0, %c121], %0 {strides = array<i32>} : memref<8x512xf32, #tpu.memory_space<vmem>>, vector<8x7xf32>,
    %c0_0 = arith.constant 0 : index
    %c384 = arith.constant 384 : index
    %2 = vector.load %arg9[%c0_0, %c384] : memref<8x512xf32, #tpu.memory_space<vmem>>, vector<8x7xf32>
    tpu.vector_store %arg9[%c0_0, %c384], %0 {strides = array<i32>} : memref<8x512xf32, #tpu.memory_space<vmem>>, vector<8x7xf32>,
    %c0_1 = arith.constant 0 : index
    %c0_2 = arith.constant 0 : index
    %c0_3 = arith.constant 0 : index
    %3 = vector.load %arg2[%c0_1, %c0_2, %c0_3] : memref<1x1x256xf32, #tpu.memory_space<vmem>>, vector<1x1x256xf32>
    %4 = vector.shape_cast %3 : vector<1x1x256xf32> to vector<1x256xf32>
    %c0_4 = arith.constant 0 : index
    %c128 = arith.constant 128 : index
    %5 = vector.load %arg9[%c0_4, %c128] : memref<8x512xf32, #tpu.memory_space<vmem>>, vector<1x256xf32>
    tpu.vector_store %arg9[%c0_4, %c128], %4 {strides = array<i32>} : memref<8x512xf32, #tpu.memory_space<vmem>>, vector<1x256xf32>,
    %c0_5 = arith.constant 0 : index
    %c121_6 = arith.constant 121 : index
    %6 = vector.load %arg9[%c0_5, %c121_6] : memref<8x512xf32, #tpu.memory_space<vmem>>, vector<1x256xf32>
    %c0_7 = arith.constant 0 : index
    %c0_8 = arith.constant 0 : index
    %7 = vector.load %arg10[%c0_7, %c0_8] : memref<128x256xf32, #tpu.memory_space<vmem>>, vector<1x256xf32>
    tpu.vector_store %arg10[%c0_7, %c0_8], %6 {strides = array<i32>} : memref<128x256xf32, #tpu.memory_space<vmem>>, vector<1x256xf32>,
    %c0_9 = arith.constant 0 : index
    %c122 = arith.constant 122 : index
    %8 = vector.load %arg9[%c0_9, %c122] : memref<8x512xf32, #tpu.memory_space<vmem>>, vector<1x256xf32>
    %c1 = arith.constant 1 : index
    %c0_10 = arith.constant 0 : index
    %9 = vector.load %arg10[%c1, %c0_10] : memref<128x256xf32, #tpu.memory_space<vmem>>, vector<1x256xf32>
    tpu.vector_store %arg10[%c1, %c0_10], %8 {strides = array<i32>} : memref<128x256xf32, #tpu.memory_space<vmem>>, vector<1x256xf32>,
    %c0_11 = arith.constant 0 : index
    %c123 = arith.constant 123 : index
    %10 = vector.load %arg9[%c0_11, %c123] : memref<8x512xf32, #tpu.memory_space<vmem>>, vector<1x256xf32>
    %c2 = arith.constant 2 : index
    %c0_12 = arith.constant 0 : index
    %11 = vector.load %arg10[%c2, %c0_12] : memref<128x256xf32, #tpu.memory_space<vmem>>, vector<1x256xf32>
    tpu.vector_store %arg10[%c2, %c0_12], %10 {strides = array<i32>} : memref<128x256xf32, #tpu.memory_space<vmem>>, vector<1x256xf32>,
    %c0_13 = arith.constant 0 : index
    %c124 = arith.constant 124 : index
    %12 = vector.load %arg9[%c0_13, %c124] : memref<8x512xf32, #tpu.memory_space<vmem>>, vector<1x256xf32>
    %c3 = arith.constant 3 : index
    %c0_14 = arith.constant 0 : index
    %13 = vector.load %arg10[%c3, %c0_14] : memref<128x256xf32, #tpu.memory_space<vmem>>, vector<1x256xf32>
    tpu.vector_store %arg10[%c3, %c0_14], %12 {strides = array<i32>} : memref<128x256xf32, #tpu.memory_space<vmem>>, vector<1x256xf32>,
    %c0_15 = arith.constant 0 : index
    %c125 = arith.constant 125 : index
    %14 = vector.load %arg9[%c0_15, %c125] : memref<8x512xf32, #tpu.memory_space<vmem>>, vector<1x256xf32>
    %c4 = arith.constant 4 : index
    %c0_16 = arith.constant 0 : index
    %15 = vector.load %arg10[%c4, %c0_16] : memref<128x256xf32, #tpu.memory_space<vmem>>, vector<1x256xf32>
    tpu.vector_store %arg10[%c4, %c0_16], %14 {strides = array<i32>} : memref<128x256xf32, #tpu.memory_space<vmem>>, vector<1x256xf32>,
    %c0_17 = arith.constant 0 : index
    %c126 = arith.constant 126 : index
    %16 = vector.load %arg9[%c0_17, %c126] : memref<8x512xf32, #tpu.memory_space<vmem>>, vector<1x256xf32>
    %c5 = arith.constant 5 : index
    %c0_18 = arith.constant 0 : index
    %17 = vector.load %arg10[%c5, %c0_18] : memref<128x256xf32, #tpu.memory_space<vmem>>, vector<1x256xf32>
    tpu.vector_store %arg10[%c5, %c0_18], %16 {strides = array<i32>} : memref<128x256xf32, #tpu.memory_space<vmem>>, vector<1x256xf32>,
    %c0_19 = arith.constant 0 : index
    %c127 = arith.constant 127 : index
    %18 = vector.load %arg9[%c0_19, %c127] : memref<8x512xf32, #tpu.memory_space<vmem>>, vector<1x256xf32>
    %c6 = arith.constant 6 : index
    %c0_20 = arith.constant 0 : index
    %19 = vector.load %arg10[%c6, %c0_20] : memref<128x256xf32, #tpu.memory_space<vmem>>, vector<1x256xf32>
    tpu.vector_store %arg10[%c6, %c0_20], %18 {strides = array<i32>} : memref<128x256xf32, #tpu.memory_space<vmem>>, vector<1x256xf32>,
    %c0_21 = arith.constant 0 : index
    %c128_22 = arith.constant 128 : index
    %20 = vector.load %arg9[%c0_21, %c128_22] : memref<8x512xf32, #tpu.memory_space<vmem>>, vector<1x256xf32>
    %c7 = arith.constant 7 : index
    %c0_23 = arith.constant 0 : index
    %21 = vector.load %arg10[%c7, %c0_23] : memref<128x256xf32, #tpu.memory_space<vmem>>, vector<1x256xf32>
    tpu.vector_store %arg10[%c7, %c0_23], %20 {strides = array<i32>} : memref<128x256xf32, #tpu.memory_space<vmem>>, vector<1x256xf32>,
    %c0_24 = arith.constant 0 : index
    %c129 = arith.constant 129 : index
    %22 = vector.load %arg9[%c0_24, %c129] : memref<8x512xf32, #tpu.memory_space<vmem>>, vector<1x256xf32>
    %c8 = arith.constant 8 : index
    %c0_25 = arith.constant 0 : index
    %23 = vector.load %arg10[%c8, %c0_25] : memref<128x256xf32, #tpu.memory_space<vmem>>, vector<1x256xf32>
    tpu.vector_store %arg10[%c8, %c0_25], %22 {strides = array<i32>} : memref<128x256xf32, #tpu.memory_space<vmem>>, vector<1x256xf32>,
    %c0_26 = arith.constant 0 : index
    %c130 = arith.constant 130 : index
    %24 = vector.load %arg9[%c0_26, %c130] : memref<8x512xf32, #tpu.memory_space<vmem>>, vector<1x256xf32>
    %c9 = arith.constant 9 : index
    %c0_27 = arith.constant 0 : index
    %25 = vector.load %arg10[%c9, %c0_27] : memref<128x256xf32, #tpu.memory_space<vmem>>, vector<1x256xf32>
    tpu.vector_store %arg10[%c9, %c0_27], %24 {strides = array<i32>} : memref<128x256xf32, #tpu.memory_space<vmem>>, vector<1x256xf32>,
    %c0_28 = arith.constant 0 : index
    %c131 = arith.constant 131 : index
    %26 = vector.load %arg9[%c0_28, %c131] : memref<8x512xf32, #tpu.memory_space<vmem>>, vector<1x256xf32>
    %c10 = arith.constant 10 : index
    %c0_29 = arith.constant 0 : index
    %27 = vector.load %arg10[%c10, %c0_29] : memref<128x256xf32, #tpu.memory_space<vmem>>, vector<1x256xf32>
    tpu.vector_store %arg10[%c10, %c0_29], %26 {strides = array<i32>} : memref<128x256xf32, #tpu.memory_space<vmem>>, vector<1x256xf32>,
    %c0_30 = arith.constant 0 : index
    %c132 = arith.constant 132 : index
    %28 = vector.load %arg9[%c0_30, %c132] : memref<8x512xf32, #tpu.memory_space<vmem>>, vector<1x256xf32>
    %c11 = arith.constant 11 : index
    %c0_31 = arith.constant 0 : index
    %29 = vector.load %arg10[%c11, %c0_31] : memref<128x256xf32, #tpu.memory_space<vmem>>, vector<1x256xf32>
    tpu.vector_store %arg10[%c11, %c0_31], %28 {strides = array<i32>} : memref<128x256xf32, #tpu.memory_space<vmem>>, vector<1x256xf32>,
    %c0_32 = arith.constant 0 : index
    %c133 = arith.constant 133 : index
    %30 = vector.load %arg9[%c0_32, %c133] : memref<8x512xf32, #tpu.memory_space<vmem>>, vector<1x256xf32>
    %c12 = arith.constant 12 : index
    %c0_33 = arith.constant 0 : index
    %31 = vector.load %arg10[%c12, %c0_33] : memref<128x256xf32, #tpu.memory_space<vmem>>, vector<1x256xf32>
    tpu.vector_store %arg10[%c12, %c0_33], %30 {strides = array<i32>} : memref<128x256xf32, #tpu.memory_space<vmem>>, vector<1x256xf32>,
    %c0_34 = arith.constant 0 : index
    %c134 = arith.constant 134 : index
    %32 = vector.load %arg9[%c0_34, %c134] : memref<8x512xf32, #tpu.memory_space<vmem>>, vector<1x256xf32>
    %c13 = arith.constant 13 : index
    %c0_35 = arith.constant 0 : index
    %33 = vector.load %arg10[%c13, %c0_35] : memref<128x256xf32, #tpu.memory_space<vmem>>, vector<1x256xf32>
    tpu.vector_store %arg10[%c13, %c0_35], %32 {strides = array<i32>} : memref<128x256xf32, #tpu.memory_space<vmem>>, vector<1x256xf32>,
    %c0_36 = arith.constant 0 : index
    %c135 = arith.constant 135 : index
    %34 = vector.load %arg9[%c0_36, %c135] : memref<8x512xf32, #tpu.memory_space<vmem>>, vector<1x256xf32>
    %c14 = arith.constant 14 : index
    %c0_37 = arith.constant 0 : index
    %35 = vector.load %arg10[%c14, %c0_37] : memref<128x256xf32, #tpu.memory_space<vmem>>, vector<1x256xf32>
    tpu.vector_store %arg10[%c14, %c0_37], %34 {strides = array<i32>} : memref<128x256xf32, #tpu.memory_space<vmem>>, vector<1x256xf32>,
    %cst_38 = arith.constant 1.000000e+00 : f32
    %36 = vector.broadcast %cst_38 : f32 to vector<1x256xf32>
    %c15 = arith.constant 15 : index
    %c0_39 = arith.constant 0 : index
    %37 = vector.load %arg10[%c15, %c0_39] : memref<128x256xf32, #tpu.memory_space<vmem>>, vector<1x256xf32>
    tpu.vector_store %arg10[%c15, %c0_39], %36 {strides = array<i32>} : memref<128x256xf32, #tpu.memory_space<vmem>>, vector<1x256xf32>,
    %c0_40 = arith.constant 0 : index
    %c0_41 = arith.constant 0 : index
    %c0_42 = arith.constant 0 : index
    %38 = vector.load %arg3[%c0_40, %c0_41, %c0_42] : memref<1x8x16xbf16, #tpu.memory_space<vmem>>, vector<1x8x16xbf16>
    %39 = vector.shape_cast %38 : vector<1x8x16xbf16> to vector<8x16xbf16>
    %c0_43 = arith.constant 0 : index
    %c0_44 = arith.constant 0 : index
    %40 = vector.load %arg10[%c0_43, %c0_44] : memref<128x256xf32, #tpu.memory_space<vmem>>, vector<16x256xf32>
    %41 = arith.truncf %40 : vector<16x256xf32> to vector<16x256xbf16>
    %cst_45 = arith.constant dense<0.000000e+00> : vector<8x256xf32>
    %42 = tpu.matmul %39, %41, %cst_45 {dimension_numbers = #tpu.dot_dimension_numbers<[1], [0], [0], [1], [0, 0, 1, 1], [], []>} : vector<8x16xbf16>, vector<16x256xbf16>, vector<8x256xf32> -> vector<8x256xf32>
    %cst_46 = arith.constant 0.000000e+00 : f32
    %43 = vector.broadcast %cst_46 : f32 to vector<8x256xf32>
    %44 = arith.cmpf oge, %42, %43 : vector<8x256xf32>
    %cst_47 = arith.constant 1.000000e-01 : f32
    %45 = vector.broadcast %cst_47 : f32 to vector<8x256xf32>
    %46 = arith.mulf %42, %45 : vector<8x256xf32>
    %47 = arith.select %44, %42, %46 : vector<8x256xi1>, vector<8x256xf32>
    %c0_48 = arith.constant 0 : index
    %c0_49 = arith.constant 0 : index
    %c0_50 = arith.constant 0 : index
    %c0_51 = arith.constant 0 : index
    %48 = vector.load %arg6[%c0_48, %c0_49, %c0_50, %c0_51] : memref<1x1x8x256xf32, #tpu.memory_space<vmem>>, vector<1x1x8x256xf32>
    %49 = vector.shape_cast %48 : vector<1x1x8x256xf32> to vector<8x256xf32>
    %50 = vector.shape_cast %47 : vector<8x256xf32> to vector<1x1x8x256xf32>
    tpu.vector_store %arg6[%c0_48, %c0_49, %c0_50, %c0_51], %50 {strides = array<i32>} : memref<1x1x8x256xf32, #tpu.memory_space<vmem>>, vector<1x1x8x256xf32>,
    %c0_52 = arith.constant 0 : index
    %c128_53 = arith.constant 128 : index
    %51 = vector.load %arg9[%c0_52, %c128_53] : memref<8x512xf32, #tpu.memory_space<vmem>>, vector<8x256xf32>
    tpu.vector_store %arg9[%c0_52, %c128_53], %47 {strides = array<i32>} : memref<8x512xf32, #tpu.memory_space<vmem>>, vector<8x256xf32>,
    %c0_54 = arith.constant 0 : index
    %c121_55 = arith.constant 121 : index
    %52 = vector.load %arg9[%c0_54, %c121_55] : memref<8x512xf32, #tpu.memory_space<vmem>>, vector<8x256xf32>
    %c0_56 = arith.constant 0 : index
    %c0_57 = arith.constant 0 : index
    %53 = vector.load %arg10[%c0_56, %c0_57] : memref<128x256xf32, #tpu.memory_space<vmem>>, vector<8x256xf32>
    tpu.vector_store %arg10[%c0_56, %c0_57], %52 {strides = array<i32>} : memref<128x256xf32, #tpu.memory_space<vmem>>, vector<8x256xf32>,
    %c0_58 = arith.constant 0 : index
    %c122_59 = arith.constant 122 : index
    %54 = vector.load %arg9[%c0_58, %c122_59] : memref<8x512xf32, #tpu.memory_space<vmem>>, vector<8x256xf32>
    %c8_60 = arith.constant 8 : index
    %c0_61 = arith.constant 0 : index
    %55 = vector.load %arg10[%c8_60, %c0_61] : memref<128x256xf32, #tpu.memory_space<vmem>>, vector<8x256xf32>
    tpu.vector_store %arg10[%c8_60, %c0_61], %54 {strides = array<i32>} : memref<128x256xf32, #tpu.memory_space<vmem>>, vector<8x256xf32>,
    %c0_62 = arith.constant 0 : index
    %c123_63 = arith.constant 123 : index
    %56 = vector.load %arg9[%c0_62, %c123_63] : memref<8x512xf32, #tpu.memory_space<vmem>>, vector<8x256xf32>
    %c16 = arith.constant 16 : index
    %c0_64 = arith.constant 0 : index
    %57 = vector.load %arg10[%c16, %c0_64] : memref<128x256xf32, #tpu.memory_space<vmem>>, vector<8x256xf32>
    tpu.vector_store %arg10[%c16, %c0_64], %56 {strides = array<i32>} : memref<128x256xf32, #tpu.memory_space<vmem>>, vector<8x256xf32>,
    %c0_65 = arith.constant 0 : index
    %c124_66 = arith.constant 124 : index
    %58 = vector.load %arg9[%c0_65, %c124_66] : memref<8x512xf32, #tpu.memory_space<vmem>>, vector<8x256xf32>
    %c24 = arith.constant 24 : index
    %c0_67 = arith.constant 0 : index
    %59 = vector.load %arg10[%c24, %c0_67] : memref<128x256xf32, #tpu.memory_space<vmem>>, vector<8x256xf32>
    tpu.vector_store %arg10[%c24, %c0_67], %58 {strides = array<i32>} : memref<128x256xf32, #tpu.memory_space<vmem>>, vector<8x256xf32>,
    %c0_68 = arith.constant 0 : index
    %c125_69 = arith.constant 125 : index
    %60 = vector.load %arg9[%c0_68, %c125_69] : memref<8x512xf32, #tpu.memory_space<vmem>>, vector<8x256xf32>
    %c32 = arith.constant 32 : index
    %c0_70 = arith.constant 0 : index
    %61 = vector.load %arg10[%c32, %c0_70] : memref<128x256xf32, #tpu.memory_space<vmem>>, vector<8x256xf32>
    tpu.vector_store %arg10[%c32, %c0_70], %60 {strides = array<i32>} : memref<128x256xf32, #tpu.memory_space<vmem>>, vector<8x256xf32>,
    %c0_71 = arith.constant 0 : index
    %c126_72 = arith.constant 126 : index
    %62 = vector.load %arg9[%c0_71, %c126_72] : memref<8x512xf32, #tpu.memory_space<vmem>>, vector<8x256xf32>
    %c40 = arith.constant 40 : index
    %c0_73 = arith.constant 0 : index
    %63 = vector.load %arg10[%c40, %c0_73] : memref<128x256xf32, #tpu.memory_space<vmem>>, vector<8x256xf32>
    tpu.vector_store %arg10[%c40, %c0_73], %62 {strides = array<i32>} : memref<128x256xf32, #tpu.memory_space<vmem>>, vector<8x256xf32>,
    %c0_74 = arith.constant 0 : index
    %c127_75 = arith.constant 127 : index
    %64 = vector.load %arg9[%c0_74, %c127_75] : memref<8x512xf32, #tpu.memory_space<vmem>>, vector<8x256xf32>
    %c48 = arith.constant 48 : index
    %c0_76 = arith.constant 0 : index
    %65 = vector.load %arg10[%c48, %c0_76] : memref<128x256xf32, #tpu.memory_space<vmem>>, vector<8x256xf32>
    tpu.vector_store %arg10[%c48, %c0_76], %64 {strides = array<i32>} : memref<128x256xf32, #tpu.memory_space<vmem>>, vector<8x256xf32>,
    %c0_77 = arith.constant 0 : index
    %c128_78 = arith.constant 128 : index
    %66 = vector.load %arg9[%c0_77, %c128_78] : memref<8x512xf32, #tpu.memory_space<vmem>>, vector<8x256xf32>
    %c56 = arith.constant 56 : index
    %c0_79 = arith.constant 0 : index
    %67 = vector.load %arg10[%c56, %c0_79] : memref<128x256xf32, #tpu.memory_space<vmem>>, vector<8x256xf32>
    tpu.vector_store %arg10[%c56, %c0_79], %66 {strides = array<i32>} : memref<128x256xf32, #tpu.memory_space<vmem>>, vector<8x256xf32>,
    %c0_80 = arith.constant 0 : index
    %c129_81 = arith.constant 129 : index
    %68 = vector.load %arg9[%c0_80, %c129_81] : memref<8x512xf32, #tpu.memory_space<vmem>>, vector<8x256xf32>
    %c64 = arith.constant 64 : index
    %c0_82 = arith.constant 0 : index
    %69 = vector.load %arg10[%c64, %c0_82] : memref<128x256xf32, #tpu.memory_space<vmem>>, vector<8x256xf32>
    tpu.vector_store %arg10[%c64, %c0_82], %68 {strides = array<i32>} : memref<128x256xf32, #tpu.memory_space<vmem>>, vector<8x256xf32>,
    %c0_83 = arith.constant 0 : index
    %c130_84 = arith.constant 130 : index
    %70 = vector.load %arg9[%c0_83, %c130_84] : memref<8x512xf32, #tpu.memory_space<vmem>>, vector<8x256xf32>
    %c72 = arith.constant 72 : index
    %c0_85 = arith.constant 0 : index
    %71 = vector.load %arg10[%c72, %c0_85] : memref<128x256xf32, #tpu.memory_space<vmem>>, vector<8x256xf32>
    tpu.vector_store %arg10[%c72, %c0_85], %70 {strides = array<i32>} : memref<128x256xf32, #tpu.memory_space<vmem>>, vector<8x256xf32>,
    %c0_86 = arith.constant 0 : index
    %c131_87 = arith.constant 131 : index
    %72 = vector.load %arg9[%c0_86, %c131_87] : memref<8x512xf32, #tpu.memory_space<vmem>>, vector<8x256xf32>
    %c80 = arith.constant 80 : index
    %c0_88 = arith.constant 0 : index
    %73 = vector.load %arg10[%c80, %c0_88] : memref<128x256xf32, #tpu.memory_space<vmem>>, vector<8x256xf32>
    tpu.vector_store %arg10[%c80, %c0_88], %72 {strides = array<i32>} : memref<128x256xf32, #tpu.memory_space<vmem>>, vector<8x256xf32>,
    %c0_89 = arith.constant 0 : index
    %c132_90 = arith.constant 132 : index
    %74 = vector.load %arg9[%c0_89, %c132_90] : memref<8x512xf32, #tpu.memory_space<vmem>>, vector<8x256xf32>
    %c88 = arith.constant 88 : index
    %c0_91 = arith.constant 0 : index
    %75 = vector.load %arg10[%c88, %c0_91] : memref<128x256xf32, #tpu.memory_space<vmem>>, vector<8x256xf32>
    tpu.vector_store %arg10[%c88, %c0_91], %74 {strides = array<i32>} : memref<128x256xf32, #tpu.memory_space<vmem>>, vector<8x256xf32>,
    %c0_92 = arith.constant 0 : index
    %c133_93 = arith.constant 133 : index
    %76 = vector.load %arg9[%c0_92, %c133_93] : memref<8x512xf32, #tpu.memory_space<vmem>>, vector<8x256xf32>
    %c96 = arith.constant 96 : index
    %c0_94 = arith.constant 0 : index
    %77 = vector.load %arg10[%c96, %c0_94] : memref<128x256xf32, #tpu.memory_space<vmem>>, vector<8x256xf32>
    tpu.vector_store %arg10[%c96, %c0_94], %76 {strides = array<i32>} : memref<128x256xf32, #tpu.memory_space<vmem>>, vector<8x256xf32>,
    %c0_95 = arith.constant 0 : index
    %c134_96 = arith.constant 134 : index
    %78 = vector.load %arg9[%c0_95, %c134_96] : memref<8x512xf32, #tpu.memory_space<vmem>>, vector<8x256xf32>
    %c104 = arith.constant 104 : index
    %c0_97 = arith.constant 0 : index
    %79 = vector.load %arg10[%c104, %c0_97] : memref<128x256xf32, #tpu.memory_space<vmem>>, vector<8x256xf32>
    tpu.vector_store %arg10[%c104, %c0_97], %78 {strides = array<i32>} : memref<128x256xf32, #tpu.memory_space<vmem>>, vector<8x256xf32>,
    %c0_98 = arith.constant 0 : index
    %c135_99 = arith.constant 135 : index
    %80 = vector.load %arg9[%c0_98, %c135_99] : memref<8x512xf32, #tpu.memory_space<vmem>>, vector<8x256xf32>
    %c112 = arith.constant 112 : index
    %c0_100 = arith.constant 0 : index
    %81 = vector.load %arg10[%c112, %c0_100] : memref<128x256xf32, #tpu.memory_space<vmem>>, vector<8x256xf32>
    tpu.vector_store %arg10[%c112, %c0_100], %80 {strides = array<i32>} : memref<128x256xf32, #tpu.memory_space<vmem>>, vector<8x256xf32>,
    %cst_101 = arith.constant 1.000000e+00 : f32
    %82 = vector.broadcast %cst_101 : f32 to vector<1x256xf32>
    %c120 = arith.constant 120 : index
    %c0_102 = arith.constant 0 : index
    %83 = vector.load %arg10[%c120, %c0_102] : memref<128x256xf32, #tpu.memory_space<vmem>>, vector<1x256xf32>
    tpu.vector_store %arg10[%c120, %c0_102], %82 {strides = array<i32>} : memref<128x256xf32, #tpu.memory_space<vmem>>, vector<1x256xf32>,
    %c0_103 = arith.constant 0 : index
    %c0_104 = arith.constant 0 : index
    %c0_105 = arith.constant 0 : index
    %84 = vector.load %arg4[%c0_103, %c0_104, %c0_105] : memref<1x8x121xbf16, #tpu.memory_space<vmem>>, vector<1x8x121xbf16>
    %85 = vector.shape_cast %84 : vector<1x8x121xbf16> to vector<8x121xbf16>
    %c0_106 = arith.constant 0 : index
    %c0_107 = arith.constant 0 : index
    %86 = vector.load %arg10[%c0_106, %c0_107] : memref<128x256xf32, #tpu.memory_space<vmem>>, vector<121x256xf32>
    %87 = arith.truncf %86 : vector<121x256xf32> to vector<121x256xbf16>
    %cst_108 = arith.constant dense<0.000000e+00> : vector<8x256xf32>
    %88 = tpu.matmul %85, %87, %cst_108 {dimension_numbers = #tpu.dot_dimension_numbers<[1], [0], [0], [1], [0, 0, 1, 1], [], []>} : vector<8x121xbf16>, vector<121x256xbf16>, vector<8x256xf32> -> vector<8x256xf32>
    %cst_109 = arith.constant 0.000000e+00 : f32
    %89 = vector.broadcast %cst_109 : f32 to vector<8x256xf32>
    %90 = arith.cmpf oge, %88, %89 : vector<8x256xf32>
    %cst_110 = arith.constant 1.000000e-01 : f32
    %91 = vector.broadcast %cst_110 : f32 to vector<8x256xf32>
    %92 = arith.mulf %88, %91 : vector<8x256xf32>
    %93 = arith.select %90, %88, %92 : vector<8x256xi1>, vector<8x256xf32>
    %c0_111 = arith.constant 0 : index
    %c0_112 = arith.constant 0 : index
    %c0_113 = arith.constant 0 : index
    %c0_114 = arith.constant 0 : index
    %94 = vector.load %arg7[%c0_111, %c0_112, %c0_113, %c0_114] : memref<1x1x8x256xf32, #tpu.memory_space<vmem>>, vector<1x1x8x256xf32>
    %95 = vector.shape_cast %94 : vector<1x1x8x256xf32> to vector<8x256xf32>
    %96 = vector.shape_cast %93 : vector<8x256xf32> to vector<1x1x8x256xf32>
    tpu.vector_store %arg7[%c0_111, %c0_112, %c0_113, %c0_114], %96 {strides = array<i32>} : memref<1x1x8x256xf32, #tpu.memory_space<vmem>>, vector<1x1x8x256xf32>,
    %c0_115 = arith.constant 0 : index
    %c128_116 = arith.constant 128 : index
    %97 = vector.load %arg9[%c0_115, %c128_116] : memref<8x512xf32, #tpu.memory_space<vmem>>, vector<8x256xf32>
    tpu.vector_store %arg9[%c0_115, %c128_116], %93 {strides = array<i32>} : memref<8x512xf32, #tpu.memory_space<vmem>>, vector<8x256xf32>,
    %c0_117 = arith.constant 0 : index
    %c127_118 = arith.constant 127 : index
    %98 = vector.load %arg9[%c0_117, %c127_118] : memref<8x512xf32, #tpu.memory_space<vmem>>, vector<8x256xf32>
    %c0_119 = arith.constant 0 : index
    %c0_120 = arith.constant 0 : index
    %99 = vector.load %arg10[%c0_119, %c0_120] : memref<128x256xf32, #tpu.memory_space<vmem>>, vector<8x256xf32>
    tpu.vector_store %arg10[%c0_119, %c0_120], %98 {strides = array<i32>} : memref<128x256xf32, #tpu.memory_space<vmem>>, vector<8x256xf32>,
    %c0_121 = arith.constant 0 : index
    %c128_122 = arith.constant 128 : index
    %100 = vector.load %arg9[%c0_121, %c128_122] : memref<8x512xf32, #tpu.memory_space<vmem>>, vector<8x256xf32>
    %c8_123 = arith.constant 8 : index
    %c0_124 = arith.constant 0 : index
    %101 = vector.load %arg10[%c8_123, %c0_124] : memref<128x256xf32, #tpu.memory_space<vmem>>, vector<8x256xf32>
    tpu.vector_store %arg10[%c8_123, %c0_124], %100 {strides = array<i32>} : memref<128x256xf32, #tpu.memory_space<vmem>>, vector<8x256xf32>,
    %c0_125 = arith.constant 0 : index
    %c129_126 = arith.constant 129 : index
    %102 = vector.load %arg9[%c0_125, %c129_126] : memref<8x512xf32, #tpu.memory_space<vmem>>, vector<8x256xf32>
    %c16_127 = arith.constant 16 : index
    %c0_128 = arith.constant 0 : index
    %103 = vector.load %arg10[%c16_127, %c0_128] : memref<128x256xf32, #tpu.memory_space<vmem>>, vector<8x256xf32>
    tpu.vector_store %arg10[%c16_127, %c0_128], %102 {strides = array<i32>} : memref<128x256xf32, #tpu.memory_space<vmem>>, vector<8x256xf32>,
    %cst_129 = arith.constant 1.000000e+00 : f32
    %104 = vector.broadcast %cst_129 : f32 to vector<1x256xf32>
    %c24_130 = arith.constant 24 : index
    %c0_131 = arith.constant 0 : index
    %105 = vector.load %arg10[%c24_130, %c0_131] : memref<128x256xf32, #tpu.memory_space<vmem>>, vector<1x256xf32>
    tpu.vector_store %arg10[%c24_130, %c0_131], %104 {strides = array<i32>} : memref<128x256xf32, #tpu.memory_space<vmem>>, vector<1x256xf32>,
    %c0_132 = arith.constant 0 : index
    %c0_133 = arith.constant 0 : index
    %c0_134 = arith.constant 0 : index
    %106 = vector.load %arg5[%c0_132, %c0_133, %c0_134] : memref<1x1x25xbf16, #tpu.memory_space<vmem>>, vector<1x1x25xbf16>
    %107 = vector.shape_cast %106 : vector<1x1x25xbf16> to vector<1x25xbf16>
    %c0_135 = arith.constant 0 : index
    %c0_136 = arith.constant 0 : index
    %108 = vector.load %arg10[%c0_135, %c0_136] : memref<128x256xf32, #tpu.memory_space<vmem>>, vector<25x256xf32>
    %109 = arith.truncf %108 : vector<25x256xf32> to vector<25x256xbf16>
    %cst_137 = arith.constant dense<0.000000e+00> : vector<1x256xf32>
    %110 = tpu.matmul %107, %109, %cst_137 {dimension_numbers = #tpu.dot_dimension_numbers<[1], [0], [0], [1], [0, 0, 1, 1], [], []>} : vector<1x25xbf16>, vector<25x256xbf16>, vector<1x256xf32> -> vector<1x256xf32>
    %c0_138 = arith.constant 0 : index
    %c0_139 = arith.constant 0 : index
    %c0_140 = arith.constant 0 : index
    %c0_141 = arith.constant 0 : index
    %111 = vector.load %arg8[%c0_138, %c0_139, %c0_140, %c0_141] : memref<1x1x1x256xf32, #tpu.memory_space<vmem>>, vector<1x1x1x256xf32>
    %112 = vector.shape_cast %111 : vector<1x1x1x256xf32> to vector<1x256xf32>
    %113 = vector.shape_cast %110 : vector<1x256xf32> to vector<1x1x1x256xf32>
    tpu.vector_store %arg8[%c0_138, %c0_139, %c0_140, %c0_141], %113 {strides = array<i32>} : memref<1x1x1x256xf32, #tpu.memory_space<vmem>>, vector<1x1x1x256xf32>,
    return
  }
  func.func @transform_0(%arg0: i32, %arg1: i32) -> (i32, i32, i32) {
    %c0_i32 = arith.constant 0 : i32
    %c0_i32_0 = arith.constant 0 : i32
    %c0_i32_1 = arith.constant 0 : i32
    return %arg1, %c0_i32, %c0_i32_0 : i32, i32, i32
  }
  func.func @transform_1(%arg0: i32, %arg1: i32) -> (i32, i32, i32) {
    %c0_i32 = arith.constant 0 : i32
    %c0_i32_0 = arith.constant 0 : i32
    %c0_i32_1 = arith.constant 0 : i32
    return %arg0, %c0_i32, %c0_i32_0 : i32, i32, i32
  }
  func.func @transform_2(%arg0: i32, %arg1: i32) -> (i32, i32, i32) {
    %c0_i32 = arith.constant 0 : i32
    %c0_i32_0 = arith.constant 0 : i32
    %c0_i32_1 = arith.constant 0 : i32
    return %arg0, %c0_i32, %c0_i32_0 : i32, i32, i32
  }
  func.func @transform_3(%arg0: i32, %arg1: i32) -> (i32, i32, i32) {
    %c0_i32 = arith.constant 0 : i32
    %c0_i32_0 = arith.constant 0 : i32
    %c0_i32_1 = arith.constant 0 : i32
    return %arg0, %c0_i32, %c0_i32_0 : i32, i32, i32
  }
  func.func @transform_4(%arg0: i32, %arg1: i32) -> (i32, i32, i32, i32) {
    %c0_i32 = arith.constant 0 : i32
    %c0_i32_0 = arith.constant 0 : i32
    %c0_i32_1 = arith.constant 0 : i32
    return %arg0, %arg1, %c0_i32, %c0_i32_0 : i32, i32, i32, i32
  }
  func.func @transform_5(%arg0: i32, %arg1: i32) -> (i32, i32, i32, i32) {
    %c0_i32 = arith.constant 0 : i32
    %c0_i32_0 = arith.constant 0 : i32
    %c0_i32_1 = arith.constant 0 : i32
    return %arg0, %arg1, %c0_i32, %c0_i32_0 : i32, i32, i32, i32
  }
  func.func @transform_6(%arg0: i32, %arg1: i32) -> (i32, i32, i32, i32) {
    %c0_i32 = arith.constant 0 : i32
    %c0_i32_0 = arith.constant 0 : i32
    %c0_i32_1 = arith.constant 0 : i32
    return %arg0, %arg1, %c0_i32, %c0_i32_0 : i32, i32, i32, i32
  }
}

</mosaic_0001>

<llo_original>
// kernel: _lambda_.1
$region0: #{_lambda_.1}
  #allocation0 [shape = 'u32[]', space=smem, size = 0x4, offset = 0x4, fixed_abs, tag = 'smem constant byte address 0x4 - core index']
  #allocation1 [shape = 'u32[72,128]{1,0:T(1,128)}', space=vmem, size = 0x9000, scoped, tag = 'internal scratch']
  #allocation2 [shape = 'f32[8,512]{1,0:T(8,128)}', space=vmem, size = 0x4000, scoped, tag = 'scratch operand']
  #allocation3 [shape = 'f32[128,256]{1,0:T(8,128)}', space=vmem, size = 0x20000, scoped, tag = 'scratch operand']
  %s0 = inlined_call_operand.vmem [shape: f32[4,1,256], index: 0, kind: input, shape index: {}]
  %s1 = inlined_call_operand.vmem [shape: bf16[2,8,16], index: 1, kind: input, shape index: {}]
  %s2 = inlined_call_operand.vmem [shape: bf16[2,8,121], index: 2, kind: input, shape index: {}]
  %s3 = inlined_call_operand.hbm [shape: bf16[2,1,25], index: 3, kind: input, shape index: {}]
  %s4 = inlined_call_operand.vmem [shape: f32[2,4,8,256], index: 4, kind: output, shape index: {0}]
  %s5 = inlined_call_operand.vmem [shape: f32[2,4,8,256], index: 5, kind: output, shape index: {1}]
  %s6 = inlined_call_operand.vmem [shape: f32[2,4,1,256], index: 6, kind: output, shape index: {2}]
  %7 = xla_tuple %s4, %s5, %s6
  %s8 = sld [smem:[#allocation0]]
  $region69: #{_lambda_.1} parent=0
    _
  %s10 = ssub.s32 1, %s8
  %s11 = scalar_select 0, %s10, %s8
  $region1: #{_lambda_.1} parent=0
    #allocation4 [shape = 'u8[1024]{0}', space=vmem, size = 0x400, scoped, tag = 'input window, operand 3']
    #allocation5 [shape = 's32[2]{0}', space=sflag, size = 0x8, scoped, tag = 'scoped memory for _lambda_.1']
    %12 = vsyncpa [#allocation5], 0
    %s13 = scalar_lea.sflag [#allocation5], 1
    %14 = vsyncpa %s13, 0
    loop: start=0, step=1, limit=10
    $region2: #{_lambda_.1} parent=1 // loop_pre_header
      _
    $region3: #{_lambda_.1} parent=1 // loop_header
      %s16 = sphi 0, %s20
      %p17 = scmp.ge.s32.totalorder %s16, 10
      %s23 = sphi 0, %s35
      %s24 = sphi 0, %s31
      %s25 = sphi 0, %s23
      %s26 = sphi 0, %s24
      %s27 = sphi 0, %s25
      %s28 = sphi 0, %s26
      %s38 = sphi 0, %s40
      %s41 = sphi 0, %s38
      %s42 = sphi 0, %s41
      %s58 = sphi 0, %s42
      %s64 = sphi 0, %s66
      %s67 = sphi 0, %s64
      %s68 = sphi 0, %s67
      %s84 = sphi 0, %s68
      %s90 = sphi 0, %s92
      %s93 = sphi 0, %s90
      %s94 = sphi 0, %s93
      %s110 = sphi 0, %s94
      %s116 = sphi 0, %s118
      %s119 = sphi 0, %s116
      %s120 = sphi 0, %s119
      %s136 = sphi 0, %s120
      %s144 = sphi 0, %s146
      %s147 = sphi 0, %s144
      %s148 = sphi 0, %s147
      %s164 = sphi 0, %s148
      %s172 = sphi 0, %s174
      %s175 = sphi 0, %s172
      %s176 = sphi 0, %s175
      %s192 = sphi 0, %s176
      %s200 = sphi 0, %s202
      %s203 = sphi 0, %s200
      %s204 = sphi 0, %s203
      %s220 = sphi 0, %s204
    $region4: #{_lambda_.1} parent=1 // loop_header_branch
      %19 = sbr.rel (%p17) target = $region8
    $region5: #{_lambda_.1} parent=1 // loop_body
      %s21 = ssub.s32 %s16, 1
      %s22 = ssub.s32 %s16, 2
      %s29 = sadd.s32 1, %s24
      %p30 = scmp.ge.s32.totalorder %s29, 4
      %s31 = scalar_select %p30, 0, %s29
      %s32 = sadd.s32 1, %s23
      %s33 = scalar_select %p30, %s32, %s23
      %p34 = scmp.ge.s32.totalorder %s33, 2
      %s35 = scalar_select %p34, 0, %s33
      %s36 = ssub.s32 %s24, %s31
      %p37 = scmp.eq.s32.totalorder %s36, 0
      %s39 = sadd.s32 %s38, 1
      %s40 = scalar_select %p37, %s38, %s39
      %p43 = pneg %p37
      %p44 = scmp.eq.s32.totalorder %s16, 7
      %p45 = por %p43, %p44
      %p46 = scmp.ne.s32.totalorder %s38, %s41
      %p47 = scmp.eq.s32.totalorder %s16, 0
      %p48 = por %p46, %p47
      %p49 = scmp.ne.s32.totalorder %s38, %s41
      %p50 = scmp.eq.s32.totalorder %s21, 7
      %p51 = por %p49, %p50
      %p52 = scmp.ne.s32.totalorder %s41, %s42
      %p53 = scmp.eq.s32.totalorder %s21, 0
      %p54 = por %p52, %p53
      %p55 = scmp.ne.s32.totalorder %s41, %s42
      %p56 = scmp.eq.s32.totalorder %s22, 7
      %p57 = por %p55, %p56
      %p59 = scmp.ne.s32.totalorder %s42, %s58
      %p60 = scmp.eq.s32.totalorder %s22, 0
      %p61 = por %p59, %p60
      %s62 = ssub.s32 %s23, %s35
      %p63 = scmp.eq.s32.totalorder %s62, 0
      %s65 = sadd.s32 %s64, 1
      %s66 = scalar_select %p63, %s64, %s65
      %p69 = pneg %p63
      %p70 = scmp.eq.s32.totalorder %s16, 7
      %p71 = por %p69, %p70
      %p72 = scmp.ne.s32.totalorder %s64, %s67
      %p73 = scmp.eq.s32.totalorder %s16, 0
      %p74 = por %p72, %p73
      %p75 = scmp.ne.s32.totalorder %s64, %s67
      %p76 = scmp.eq.s32.totalorder %s21, 7
      %p77 = por %p75, %p76
      %p78 = scmp.ne.s32.totalorder %s67, %s68
      %p79 = scmp.eq.s32.totalorder %s21, 0
      %p80 = por %p78, %p79
      %p81 = scmp.ne.s32.totalorder %s67, %s68
      %p82 = scmp.eq.s32.totalorder %s22, 7
      %p83 = por %p81, %p82
      %p85 = scmp.ne.s32.totalorder %s68, %s84
      %p86 = scmp.eq.s32.totalorder %s22, 0
      %p87 = por %p85, %p86
      %s88 = ssub.s32 %s23, %s35
      %p89 = scmp.eq.s32.totalorder %s88, 0
      %s91 = sadd.s32 %s90, 1
      %s92 = scalar_select %p89, %s90, %s91
      %p95 = pneg %p89
      %p96 = scmp.eq.s32.totalorder %s16, 7
      %p97 = por %p95, %p96
      %p98 = scmp.ne.s32.totalorder %s90, %s93
      %p99 = scmp.eq.s32.totalorder %s16, 0
      %p100 = por %p98, %p99
      %p101 = scmp.ne.s32.totalorder %s90, %s93
      %p102 = scmp.eq.s32.totalorder %s21, 7
      %p103 = por %p101, %p102
      %p104 = scmp.ne.s32.totalorder %s93, %s94
      %p105 = scmp.eq.s32.totalorder %s21, 0
      %p106 = por %p104, %p105
      %p107 = scmp.ne.s32.totalorder %s93, %s94
      %p108 = scmp.eq.s32.totalorder %s22, 7
      %p109 = por %p107, %p108
      %p111 = scmp.ne.s32.totalorder %s94, %s110
      %p112 = scmp.eq.s32.totalorder %s22, 0
      %p113 = por %p111, %p112
      %s114 = ssub.s32 %s23, %s35
      %p115 = scmp.eq.s32.totalorder %s114, 0
      %s117 = sadd.s32 %s116, 1
      %s118 = scalar_select %p115, %s116, %s117
      %p121 = pneg %p115
      %p122 = scmp.eq.s32.totalorder %s16, 7
      %p123 = por %p121, %p122
      %p124 = scmp.ne.s32.totalorder %s116, %s119
      %p125 = scmp.eq.s32.totalorder %s16, 0
      %p126 = por %p124, %p125
      %p127 = scmp.ne.s32.totalorder %s116, %s119
      %p128 = scmp.eq.s32.totalorder %s21, 7
      %p129 = por %p127, %p128
      %p130 = scmp.ne.s32.totalorder %s119, %s120
      %p131 = scmp.eq.s32.totalorder %s21, 0
      %p132 = por %p130, %p131
      %p133 = scmp.ne.s32.totalorder %s119, %s120
      %p134 = scmp.eq.s32.totalorder %s22, 7
      %p135 = por %p133, %p134
      %p137 = scmp.ne.s32.totalorder %s120, %s136
      %p138 = scmp.eq.s32.totalorder %s22, 0
      %p139 = por %p137, %p138
      %s140 = ssub.s32 %s23, %s35
      %s141 = ssub.s32 %s24, %s31
      %s142 = sor.u32 %s140, %s141
      %p143 = scmp.eq.s32.totalorder %s142, 0
      %s145 = sadd.s32 %s144, 1
      %s146 = scalar_select %p143, %s144, %s145
      %p149 = pneg %p143
      %p150 = scmp.eq.s32.totalorder %s16, 7
      %p151 = por %p149, %p150
      %p152 = scmp.ne.s32.totalorder %s144, %s147
      %p153 = scmp.eq.s32.totalorder %s16, 0
      %p154 = por %p152, %p153
      %p155 = scmp.ne.s32.totalorder %s144, %s147
      %p156 = scmp.eq.s32.totalorder %s21, 7
      %p157 = por %p155, %p156
      %p158 = scmp.ne.s32.totalorder %s147, %s148
      %p159 = scmp.eq.s32.totalorder %s21, 0
      %p160 = por %p158, %p159
      %p161 = scmp.ne.s32.totalorder %s147, %s148
      %p162 = scmp.eq.s32.totalorder %s22, 7
      %p163 = por %p161, %p162
      %p165 = scmp.ne.s32.totalorder %s148, %s164
      %p166 = scmp.eq.s32.totalorder %s22, 0
      %p167 = por %p165, %p166
      %s168 = ssub.s32 %s23, %s35
      %s169 = ssub.s32 %s24, %s31
      %s170 = sor.u32 %s168, %s169
      %p171 = scmp.eq.s32.totalorder %s170, 0
      %s173 = sadd.s32 %s172, 1
      %s174 = scalar_select %p171, %s172, %s173
      %p177 = pneg %p171
      %p178 = scmp.eq.s32.totalorder %s16, 7
      %p179 = por %p177, %p178
      %p180 = scmp.ne.s32.totalorder %s172, %s175
      %p181 = scmp.eq.s32.totalorder %s16, 0
      %p182 = por %p180, %p181
      %p183 = scmp.ne.s32.totalorder %s172, %s175
      %p184 = scmp.eq.s32.totalorder %s21, 7
      %p185 = por %p183, %p184
      %p186 = scmp.ne.s32.totalorder %s175, %s176
      %p187 = scmp.eq.s32.totalorder %s21, 0
      %p188 = por %p186, %p187
      %p189 = scmp.ne.s32.totalorder %s175, %s176
      %p190 = scmp.eq.s32.totalorder %s22, 7
      %p191 = por %p189, %p190
      %p193 = scmp.ne.s32.totalorder %s176, %s192
      %p194 = scmp.eq.s32.totalorder %s22, 0
      %p195 = por %p193, %p194
      %s196 = ssub.s32 %s23, %s35
      %s197 = ssub.s32 %s24, %s31
      %s198 = sor.u32 %s196, %s197
      %p199 = scmp.eq.s32.totalorder %s198, 0
      %s201 = sadd.s32 %s200, 1
      %s202 = scalar_select %p199, %s200, %s201
      %p205 = pneg %p199
      %p206 = scmp.eq.s32.totalorder %s16, 7
      %p207 = por %p205, %p206
      %p208 = scmp.ne.s32.totalorder %s200, %s203
      %p209 = scmp.eq.s32.totalorder %s16, 0
      %p210 = por %p208, %p209
      %p211 = scmp.ne.s32.totalorder %s200, %s203
      %p212 = scmp.eq.s32.totalorder %s21, 7
      %p213 = por %p211, %p212
      %p214 = scmp.ne.s32.totalorder %s203, %s204
      %p215 = scmp.eq.s32.totalorder %s21, 0
      %p216 = por %p214, %p215
      %p217 = scmp.ne.s32.totalorder %s203, %s204
      %p218 = scmp.eq.s32.totalorder %s22, 7
      %p219 = por %p217, %p218
      %p221 = scmp.ne.s32.totalorder %s204, %s220
      %p222 = scmp.eq.s32.totalorder %s22, 0
      %p223 = por %p221, %p222
      %p224 = scmp.le.s32.totalorder 1, %s16
      %p225 = scmp.lt.s32.totalorder %s16, 9
      %p226 = pnand %p224, %p225
      %p227 = pneg %p226
      // Predicated region
      $region9: #{_lambda_.1} parent=5 // pred_check
        _
      $region10: #{_lambda_.1} parent=5 // pred_check_branch
        %229 = sbr.rel (%p226) target = $region12
      $region11: #{_lambda_.1} parent=5 // pred_region
        %s230 = ssub.s32 %s16, 1
      $region12: #{_lambda_.1} parent=5 // pred_fallthru
        _
      %p231 = scmp.lt.s32.totalorder %s16, 8
      // Predicated region
      $region13: #{_lambda_.1} parent=5 // pred_check
        %p232 = pneg %p231
      $region14: #{_lambda_.1} parent=5 // pred_check_branch
        %234 = sbr.rel (%p232) target = $region16
      $region15: #{_lambda_.1} parent=5 // pred_region
        // Predicated region
        $region17: #{_lambda_.1} parent=15 // pred_check
          %p235 = pneg %p48
        $region18: #{_lambda_.1} parent=15 // pred_check_branch
          %237 = sbr.rel (%p235) target = $region20
        $region19: #{_lambda_.1} parent=15 // pred_region
          %p238 = scmp.lt.s32.totalorder %s24, 3
          %s239 = scalar_select %p238, %s24, 3
          %s240 = smul.addr %s239, 2
          %s241 = scalar_lea.vmem %s0, %s240
        $region20: #{_lambda_.1} parent=15 // pred_fallthru
          _
        // Predicated region
        $region21: #{_lambda_.1} parent=15 // pred_check
          %p242 = pneg %p74
        $region22: #{_lambda_.1} parent=15 // pred_check_branch
          %244 = sbr.rel (%p242) target = $region24
        $region23: #{_lambda_.1} parent=15 // pred_region
          %p245 = scmp.lt.s32.totalorder %s23, 1
          %s246 = scalar_select %p245, %s23, 1
          %s247 = smul.addr %s246, 4
          %s248 = scalar_lea.vmem %s1, %s247
        $region24: #{_lambda_.1} parent=15 // pred_fallthru
          _
        // Predicated region
        $region25: #{_lambda_.1} parent=15 // pred_check
          %p249 = pneg %p100
        $region26: #{_lambda_.1} parent=15 // pred_check_branch
          %251 = sbr.rel (%p249) target = $region28
        $region27: #{_lambda_.1} parent=15 // pred_region
          %p252 = scmp.lt.s32.totalorder %s23, 1
          %s253 = scalar_select %p252, %s23, 1
          %s254 = smul.addr %s253, 4
          %s255 = scalar_lea.vmem %s2, %s254
        $region28: #{_lambda_.1} parent=15 // pred_fallthru
          _
        // Predicated region
        $region29: #{_lambda_.1} parent=15 // pred_check
          %p256 = pneg %p126
        $region30: #{_lambda_.1} parent=15 // pred_check_branch
          %258 = sbr.rel (%p256) target = $region32
        $region31: #{_lambda_.1} parent=15 // pred_region
          %s259 = sand.u32 %s116, 1
          %s260 = scalar_lea.sflag [#allocation5], %s259
          %s261 = sand.u32 %s116, 1
          %s262 = scalar_lea.vmem [#allocation4], %s261
          %264 = vsyncadd %s260, 0
          %s265 = scalar_lea.hbm %s3, %s23
          %s267 = sshll.u32 %s265, 4
          %s268 = int_to_ptr.hbm [resolvable:$true] %s267
          %s269 = sshll.u32 %s262, 4
          %s270 = int_to_ptr.vmem [resolvable:$true] %s269
          %272 = dma.hbm_to_vmem [thread:$0]  %s268, 16, %s270, %s260
        $region32: #{_lambda_.1} parent=15 // pred_fallthru
          _
      $region16: #{_lambda_.1} parent=5 // pred_fallthru
        _
      %p273 = scmp.le.s32.totalorder 1, %s16
      %p274 = scmp.lt.s32.totalorder %s16, 9
      %p275 = pnand %p273, %p274
      %p276 = pneg %p275
      // Predicated region
      $region33: #{_lambda_.1} parent=5 // pred_check
        _
      $region34: #{_lambda_.1} parent=5 // pred_check_branch
        %278 = sbr.rel (%p275) target = $region36
      $region35: #{_lambda_.1} parent=5 // pred_region
        %s279 = ssub.s32 %s16, 1
        %s280 = sand.u32 %s119, 1
        %s281 = scalar_lea.sflag [#allocation5], %s280
        %s282 = sand.u32 %s119, 1
        %s283 = scalar_lea.vmem [#allocation4], %s282
        // Predicated region
        $region37: #{_lambda_.1} parent=35 // pred_check
          %p284 = pneg %p132
        $region38: #{_lambda_.1} parent=35 // pred_check_branch
          %286 = sbr.rel (%p284) target = $region40
        $region39: #{_lambda_.1} parent=35 // pred_region
          %288 = dma.done %s281, 16
        $region40: #{_lambda_.1} parent=35 // pred_fallthru
          _
        %p289 = scmp.lt.s32.totalorder %s26, 3
        %s290 = scalar_select %p289, %s26, 3
        %s291 = smul.addr %s290, 2
        %s292 = scalar_lea.vmem %s0, %s291
        %p293 = pneg %p54
        %p294 = pneg %p51
        %p295 = scmp.lt.s32.totalorder %s25, 1
        %s296 = scalar_select %p295, %s25, 1
        %s297 = smul.addr %s296, 4
        %s298 = scalar_lea.vmem %s1, %s297
        %p299 = pneg %p80
        %p300 = pneg %p77
        %p301 = scmp.lt.s32.totalorder %s25, 1
        %s302 = scalar_select %p301, %s25, 1
        %s303 = smul.addr %s302, 4
        %s304 = scalar_lea.vmem %s2, %s303
        %p305 = pneg %p106
        %p306 = pneg %p103
        %s307 = sand.u32 %s119, 1
        %s308 = scalar_lea.sflag [#allocation5], %s307
        %s309 = sand.u32 %s119, 1
        %s310 = scalar_lea.vmem [#allocation4], %s309
        %p311 = pneg %p132
        %p312 = pneg %p129
        %p313 = pneg %p160
        %p314 = pneg %p157
        %p315 = scmp.lt.s32.totalorder %s25, 1
        %s316 = scalar_select %p315, %s25, 1
        %p317 = scmp.lt.s32.totalorder %s26, 3
        %s318 = scalar_select %p317, %s26, 3
        %s319 = smul.addr %s318, 2
        %s320 = smul.addr %s316, 8
        %s321 = sadd.s32 %s319, %s320
        %s322 = smul.addr %s321, 8
        %s323 = scalar_lea.vmem %s4, %s322
        %p324 = pneg %p188
        %p325 = pneg %p185
        %p326 = scmp.lt.s32.totalorder %s25, 1
        %s327 = scalar_select %p326, %s25, 1
        %p328 = scmp.lt.s32.totalorder %s26, 3
        %s329 = scalar_select %p328, %s26, 3
        %s330 = smul.addr %s329, 2
        %s331 = smul.addr %s327, 8
        %s332 = sadd.s32 %s330, %s331
        %s333 = smul.addr %s332, 8
        %s334 = scalar_lea.vmem %s5, %s333
        %p335 = pneg %p216
        %p336 = pneg %p213
        %p337 = scmp.lt.s32.totalorder %s25, 1
        %s338 = scalar_select %p337, %s25, 1
        %p339 = scmp.lt.s32.totalorder %s26, 3
        %s340 = scalar_select %p339, %s26, 3
        %s341 = smul.addr %s340, 2
        %s342 = smul.addr %s338, 8
        %s343 = sadd.s32 %s341, %s342
        %s344 = scalar_lea.vmem %s6, %s343
        %p345 = scmp.lt.s32.totalorder %s26, 3
        %s346 = scalar_select %p345, %s26, 3
        %s347 = smul.addr %s346, 2
        %s348 = scalar_lea.vmem %s0, %s347
        %p349 = scmp.lt.s32.totalorder %s25, 1
        %s350 = scalar_select %p349, %s25, 1
        %s351 = smul.addr %s350, 4
        %s352 = scalar_lea.vmem %s1, %s351
        %p353 = scmp.lt.s32.totalorder %s25, 1
        %s354 = scalar_select %p353, %s25, 1
        %s355 = smul.addr %s354, 4
        %s356 = scalar_lea.vmem %s2, %s355
        %p357 = scmp.lt.s32.totalorder %s25, 1
        %s358 = scalar_select %p357, %s25, 1
        %p359 = scmp.lt.s32.totalorder %s26, 3
        %s360 = scalar_select %p359, %s26, 3
        %s361 = smul.addr %s360, 2
        %s362 = smul.addr %s358, 8
        %s363 = sadd.s32 %s361, %s362
        %s364 = smul.addr %s363, 8
        %s365 = scalar_lea.vmem %s4, %s364
        %p366 = scmp.lt.s32.totalorder %s25, 1
        %s367 = scalar_select %p366, %s25, 1
        %p368 = scmp.lt.s32.totalorder %s26, 3
        %s369 = scalar_select %p368, %s26, 3
        %s370 = smul.addr %s369, 2
        %s371 = smul.addr %s367, 8
        %s372 = sadd.s32 %s370, %s371
        %s373 = smul.addr %s372, 8
        %s374 = scalar_lea.vmem %s5, %s373
        %p375 = scmp.lt.s32.totalorder %s25, 1
        %s376 = scalar_select %p375, %s25, 1
        %p377 = scmp.lt.s32.totalorder %s26, 3
        %s378 = scalar_select %p377, %s26, 3
        %s379 = smul.addr %s378, 2
        %s380 = smul.addr %s376, 8
        %s381 = sadd.s32 %s379, %s380
        %s382 = scalar_lea.vmem %s6, %s381
        %vm384 = vcmask 1048520
        %385 = vst.msk [vmem:[#allocation2] sm:$0xff] %vm384, 0.0
        %vm386 = vcmask 56320
        %387 = vst.msk [vmem:[#allocation2 + $0x18] sm:$0xff] %vm386, 0.0
        %v388 = vld [vmem:[%s348] sm:$0x3]
        %v389 = vlaneseq
        %vm390 = vcmp.ge.s32.totalorder %v389, 0
        %vm391 = vcmp.lt.s32.totalorder %v389, 256
        %vm392 = vmand %vm390, %vm391
        %s393 = scalar_lea.vmem [#allocation2], 8
        %394 = vst.msk [vmem:[%s393] ss:$8 sm:$0x3] %vm392, %v388
        %395 = vst.msk [vmem:[%s393] ss:$8 sm:$0x0] %vm392, %v388
        %v396 = vld [vmem:[#allocation2] ss:$8 sm:$0x7]
        %398 = vrot.lane.b32.xlu0 %v396, 7
        %v399 = vpop.permute.xlu0 %398
        %v400 = vrot.slane %v399, 1
        %v401 = vsel %vm386, %v399, %v400
        %403 = vst.msk [vmem:[#allocation3] ss:$8 sm:$0x3] %vm392, %v401
        %404 = vst.msk [vmem:[#allocation3] ss:$8 sm:$0x0] %vm392, %v401
        %v405 = vld [vmem:[#allocation2] ss:$8 sm:$0x7]
        %407 = vrot.lane.b32.xlu0 %v405, 6
        %v408 = vpop.permute.xlu0 %407
        %v409 = vrot.slane %v408, 1
        %vm410 = vcmask 48128
        %v411 = vsel %vm410, %v408, %v409
        %s413 = scalar_lea.vmem [#allocation3], 1
        %414 = vst.msk [vmem:[%s413] ss:$8 sm:$0x3] %vm392, %v411
        %415 = vst.msk [vmem:[%s413] ss:$8 sm:$0x0] %vm392, %v411
        %v416 = vld [vmem:[#allocation2] ss:$8 sm:$0x7]
        %418 = vrot.lane.b32.xlu0 %v416, 5
        %v419 = vpop.permute.xlu0 %418
        %v420 = vrot.slane %v419, 1
        %vm421 = vcmask 39936
        %v422 = vsel %vm421, %v419, %v420
        %s424 = scalar_lea.vmem [#allocation3], 2
        %425 = vst.msk [vmem:[%s424] ss:$8 sm:$0x3] %vm392, %v422
        %426 = vst.msk [vmem:[%s424] ss:$8 sm:$0x0] %vm392, %v422
        %v427 = vld [vmem:[#allocation2] ss:$8 sm:$0x7]
        %429 = vrot.lane.b32.xlu0 %v427, 4
        %v430 = vpop.permute.xlu0 %429
        %v431 = vrot.slane %v430, 1
        %vm432 = vcmask 31744
        %v433 = vsel %vm432, %v430, %v431
        %s435 = scalar_lea.vmem [#allocation3], 3
        %436 = vst.msk [vmem:[%s435] ss:$8 sm:$0x3] %vm392, %v433
        %437 = vst.msk [vmem:[%s435] ss:$8 sm:$0x0] %vm392, %v433
        %v438 = vld [vmem:[#allocation2] ss:$8 sm:$0x7]
        %440 = vrot.lane.b32.xlu0 %v438, 3
        %v441 = vpop.permute.xlu0 %440
        %v442 = vrot.slane %v441, 1
        %vm443 = vcmask 23552
        %v444 = vsel %vm443, %v441, %v442
        %s446 = scalar_lea.vmem [#allocation3], 4
        %447 = vst.msk [vmem:[%s446] ss:$8 sm:$0x3] %vm392, %v444
        %448 = vst.msk [vmem:[%s446] ss:$8 sm:$0x0] %vm392, %v444
        %v449 = vld [vmem:[#allocation2] ss:$8 sm:$0x7]
        %451 = vrot.lane.b32.xlu0 %v449, 2
        %v452 = vpop.permute.xlu0 %451
        %v453 = vrot.slane %v452, 1
        %vm454 = vcmask 15360
        %v455 = vsel %vm454, %v452, %v453
        %s457 = scalar_lea.vmem [#allocation3], 5
        %458 = vst.msk [vmem:[%s457] ss:$8 sm:$0x3] %vm392, %v455
        %459 = vst.msk [vmem:[%s457] ss:$8 sm:$0x0] %vm392, %v455
        %v460 = vld [vmem:[#allocation2] ss:$8 sm:$0x7]
        %462 = vrot.lane.b32.xlu0 %v460, 1
        %v463 = vpop.permute.xlu0 %462
        %v464 = vrot.slane %v463, 1
        %vm465 = vcmask 7168
        %v466 = vsel %vm465, %v463, %v464
        %s468 = scalar_lea.vmem [#allocation3], 6
        %469 = vst.msk [vmem:[%s468] ss:$8 sm:$0x3] %vm392, %v466
        %470 = vst.msk [vmem:[%s468] ss:$8 sm:$0x0] %vm392, %v466
        %v471 = vld [vmem:[%s393] ss:$8 sm:$0x3]
        %s472 = scalar_lea.vmem [#allocation3], 7
        %473 = vst.msk [vmem:[%s472] ss:$8 sm:$0x3] %vm392, %v471
        %474 = vst.msk [vmem:[%s472] ss:$8 sm:$0x0] %vm392, %v471
        %s475 = scalar_lea.vmem [#allocation2], 8
        %v476 = vld [vmem:[%s475] ss:$8 sm:$0x7]
        %478 = vrot.lane.b32.xlu0 %v476, 127
        %v479 = vpop.permute.xlu0 %478
        %v480 = vrot.slane %v479, 1
        %vm481 = vcmask 1039360
        %v482 = vsel %vm481, %v479, %v480
        %s484 = scalar_lea.vmem [#allocation3], 16
        %485 = vst.msk [vmem:[%s484] ss:$8 sm:$0x3] %vm392, %v482
        %486 = vst.msk [vmem:[%s484] ss:$8 sm:$0x0] %vm392, %v482
        %v487 = vld [vmem:[%s475] ss:$8 sm:$0x7]
        %489 = vrot.lane.b32.xlu0 %v487, 126
        %v490 = vpop.permute.xlu0 %489
        %v491 = vrot.slane %v490, 1
        %vm492 = vcmask 1031168
        %v493 = vsel %vm492, %v490, %v491
        %s495 = scalar_lea.vmem [#allocation3], 17
        %496 = vst.msk [vmem:[%s495] ss:$8 sm:$0x3] %vm392, %v493
        %497 = vst.msk [vmem:[%s495] ss:$8 sm:$0x0] %vm392, %v493
        %v498 = vld [vmem:[%s475] ss:$8 sm:$0x7]
        %500 = vrot.lane.b32.xlu0 %v498, 125
        %v501 = vpop.permute.xlu0 %500
        %v502 = vrot.slane %v501, 1
        %vm503 = vcmask 1022976
        %v504 = vsel %vm503, %v501, %v502
        %s506 = scalar_lea.vmem [#allocation3], 18
        %507 = vst.msk [vmem:[%s506] ss:$8 sm:$0x3] %vm392, %v504
        %508 = vst.msk [vmem:[%s506] ss:$8 sm:$0x0] %vm392, %v504
        %v509 = vld [vmem:[%s475] ss:$8 sm:$0x7]
        %511 = vrot.lane.b32.xlu0 %v509, 124
        %v512 = vpop.permute.xlu0 %511
        %v513 = vrot.slane %v512, 1
        %vm514 = vcmask 1014784
        %v515 = vsel %vm514, %v512, %v513
        %s517 = scalar_lea.vmem [#allocation3], 19
        %518 = vst.msk [vmem:[%s517] ss:$8 sm:$0x3] %vm392, %v515
        %519 = vst.msk [vmem:[%s517] ss:$8 sm:$0x0] %vm392, %v515
        %v520 = vld [vmem:[%s475] ss:$8 sm:$0x7]
        %522 = vrot.lane.b32.xlu0 %v520, 123
        %v523 = vpop.permute.xlu0 %522
        %v524 = vrot.slane %v523, 1
        %vm525 = vcmask 1006592
        %v526 = vsel %vm525, %v523, %v524
        %s528 = scalar_lea.vmem [#allocation3], 20
        %529 = vst.msk [vmem:[%s528] ss:$8 sm:$0x3] %vm392, %v526
        %530 = vst.msk [vmem:[%s528] ss:$8 sm:$0x0] %vm392, %v526
        %v531 = vld [vmem:[%s475] ss:$8 sm:$0x7]
        %533 = vrot.lane.b32.xlu0 %v531, 122
        %v534 = vpop.permute.xlu0 %533
        %v535 = vrot.slane %v534, 1
        %vm536 = vcmask 998400
        %v537 = vsel %vm536, %v534, %v535
        %s539 = scalar_lea.vmem [#allocation3], 21
        %540 = vst.msk [vmem:[%s539] ss:$8 sm:$0x3] %vm392, %v537
        %541 = vst.msk [vmem:[%s539] ss:$8 sm:$0x0] %vm392, %v537
        %v542 = vld [vmem:[%s475] ss:$8 sm:$0x7]
        %544 = vrot.lane.b32.xlu0 %v542, 121
        %v545 = vpop.permute.xlu0 %544
        %v546 = vrot.slane %v545, 1
        %vm547 = vcmask 990208
        %v548 = vsel %vm547, %v545, %v546
        %s550 = scalar_lea.vmem [#allocation3], 22
        %551 = vst.msk [vmem:[%s550] ss:$8 sm:$0x3] %vm392, %v548
        %552 = vst.msk [vmem:[%s550] ss:$8 sm:$0x0] %vm392, %v548
        %s553 = scalar_lea.vmem [#allocation3], 23
        %554 = vst.msk [vmem:[%s553] ss:$8 sm:$0x3] %vm392, 1.0
        %555 = vst.msk [vmem:[%s553] ss:$8 sm:$0x0] %vm392, 1.0
        %v556 = vld [vmem:[%s352] sm:$0xf]
        %v557 = vld [vmem:[#allocation3] sm:$0xff]
        %v558 = vld [vmem:[#allocation3 + $0x8] sm:$0xff]
        %v559 = vld [vmem:[#allocation3 + $0x10] sm:$0xff]
        %v560 = vld [vmem:[#allocation3 + $0x18] sm:$0xff]
        %v561 = vpack.c.bf16 %v559, %v557
        %v562 = vpack.c.bf16 %v560, %v558
        %vm563 = vcmask 130048
        %v565 = vsel %vm563, %v556, 0
        %567 = vmatpush.bf16.msra.mxu0 0
        %568 = vmatpush.bf16.msra.mxu0 0
        %569 = vmatpush.bf16.msra.mxu0 0
        %570 = vmatpush.bf16.msra.mxu0 0
        %571 = vmatpush.bf16.msra.mxu0 0
        %572 = vmatpush.bf16.msra.mxu0 0
        %573 = vmatpush.bf16.msra.mxu0 0
        %574 = vmatpush.bf16.msra.mxu0 %v561
        %575 = vmatmul.bf16.gmra.mxu0 %v565
        %v576 = vpop.f32.mrf.mxu0
        %v577 = vadd.f32 0.0, %v576
        %v578 = vpop.f32.mrf.mxu0
        %579 = vdwg.mxu0
        %580 = vmatpush.bf16.msra.mxu0 0
        %581 = vmatpush.bf16.msra.mxu0 0
        %582 = vmatpush.bf16.msra.mxu0 0
        %583 = vmatpush.bf16.msra.mxu0 0
        %584 = vmatpush.bf16.msra.mxu0 0
        %585 = vmatpush.bf16.msra.mxu0 0
        %586 = vmatpush.bf16.msra.mxu0 0
        %587 = vmatpush.bf16.msra.mxu0 %v562
        %588 = vmatmul.bf16.gmra.mxu0 %v565
        %v589 = vpop.f32.mrf.mxu0
        %v590 = vadd.f32 0.0, %v589
        %v591 = vpop.f32.mrf.mxu0
        %592 = vdwg.mxu0
        %vm593 = vcmp.ge.f32.partialorder %v577, 0.0
        %vm594 = vcmp.ge.f32.partialorder %v590, 0.0
        %v595 = vmul.f32 %v577, 0.1
        %v596 = vmul.f32 %v590, 0.1
        %v597 = vsel %vm593, %v577, %v595
        %v598 = vsel %vm594, %v590, %v596
        %599 = vst [vmem:[%s365] sm:$0xff] %v597
        %600 = vst [vmem:[%s365 + $0x8] sm:$0xff] %v598
        %601 = vst [vmem:[#allocation2 + $0x8] sm:$0xff] %v597
        %602 = vst [vmem:[#allocation2 + $0x10] sm:$0xff] %v598
        %v603 = vld [vmem:[#allocation2] sm:$0xff]
        %v604 = vld [vmem:[#allocation2 + $0x8] sm:$0xff]
        %v605 = vld [vmem:[#allocation2 + $0x10] sm:$0xff]
        %609 = vrot.lane.b32.xlu0 %v603, 7
        %v610 = vpop.permute.xlu0 %609
        %611 = vrot.lane.b32.xlu0 %v604, 7
        %v612 = vpop.permute.xlu0 %611
        %613 = vrot.lane.b32.xlu0 %v605, 7
        %v614 = vpop.permute.xlu0 %613
        %v615 = vsel %vm386, %v610, %v612
        %v616 = vsel %vm386, %v612, %v614
        %619 = vst [vmem:[#allocation3] sm:$0xff] %v615
        %620 = vst [vmem:[#allocation3 + $0x8] sm:$0xff] %v616
        %v621 = vld [vmem:[#allocation2] sm:$0xff]
        %v622 = vld [vmem:[#allocation2 + $0x8] sm:$0xff]
        %v623 = vld [vmem:[#allocation2 + $0x10] sm:$0xff]
        %627 = vrot.lane.b32.xlu0 %v621, 6
        %v628 = vpop.permute.xlu0 %627
        %629 = vrot.lane.b32.xlu0 %v622, 6
        %v630 = vpop.permute.xlu0 %629
        %631 = vrot.lane.b32.xlu0 %v623, 6
        %v632 = vpop.permute.xlu0 %631
        %v633 = vsel %vm410, %v628, %v630
        %v634 = vsel %vm410, %v630, %v632
        %637 = vst [vmem:[#allocation3 + $0x10] sm:$0xff] %v633
        %638 = vst [vmem:[#allocation3 + $0x18] sm:$0xff] %v634
        %v639 = vld [vmem:[#allocation2] sm:$0xff]
        %v640 = vld [vmem:[#allocation2 + $0x8] sm:$0xff]
        %v641 = vld [vmem:[#allocation2 + $0x10] sm:$0xff]
        %645 = vrot.lane.b32.xlu0 %v639, 5
        %v646 = vpop.permute.xlu0 %645
        %647 = vrot.lane.b32.xlu0 %v640, 5
        %v648 = vpop.permute.xlu0 %647
        %649 = vrot.lane.b32.xlu0 %v641, 5
        %v650 = vpop.permute.xlu0 %649
        %v651 = vsel %vm421, %v646, %v648
        %v652 = vsel %vm421, %v648, %v650
        %655 = vst [vmem:[#allocation3 + $0x20] sm:$0xff] %v651
        %656 = vst [vmem:[#allocation3 + $0x28] sm:$0xff] %v652
        %v657 = vld [vmem:[#allocation2] sm:$0xff]
        %v658 = vld [vmem:[#allocation2 + $0x8] sm:$0xff]
        %v659 = vld [vmem:[#allocation2 + $0x10] sm:$0xff]
        %663 = vrot.lane.b32.xlu0 %v657, 4
        %v664 = vpop.permute.xlu0 %663
        %665 = vrot.lane.b32.xlu0 %v658, 4
        %v666 = vpop.permute.xlu0 %665
        %667 = vrot.lane.b32.xlu0 %v659, 4
        %v668 = vpop.permute.xlu0 %667
        %v669 = vsel %vm432, %v664, %v666
        %v670 = vsel %vm432, %v666, %v668
        %673 = vst [vmem:[#allocation3 + $0x30] sm:$0xff] %v669
        %674 = vst [vmem:[#allocation3 + $0x38] sm:$0xff] %v670
        %v675 = vld [vmem:[#allocation2] sm:$0xff]
        %v676 = vld [vmem:[#allocation2 + $0x8] sm:$0xff]
        %v677 = vld [vmem:[#allocation2 + $0x10] sm:$0xff]
        %681 = vrot.lane.b32.xlu0 %v675, 3
        %v682 = vpop.permute.xlu0 %681
        %683 = vrot.lane.b32.xlu0 %v676, 3
        %v684 = vpop.permute.xlu0 %683
        %685 = vrot.lane.b32.xlu0 %v677, 3
        %v686 = vpop.permute.xlu0 %685
        %v687 = vsel %vm443, %v682, %v684
        %v688 = vsel %vm443, %v684, %v686
        %691 = vst [vmem:[#allocation3 + $0x40] sm:$0xff] %v687
        %692 = vst [vmem:[#allocation3 + $0x48] sm:$0xff] %v688
        %v693 = vld [vmem:[#allocation2] sm:$0xff]
        %v694 = vld [vmem:[#allocation2 + $0x8] sm:$0xff]
        %v695 = vld [vmem:[#allocation2 + $0x10] sm:$0xff]
        %699 = vrot.lane.b32.xlu0 %v693, 2
        %v700 = vpop.permute.xlu0 %699
        %701 = vrot.lane.b32.xlu0 %v694, 2
        %v702 = vpop.permute.xlu0 %701
        %703 = vrot.lane.b32.xlu0 %v695, 2
        %v704 = vpop.permute.xlu0 %703
        %v705 = vsel %vm454, %v700, %v702
        %v706 = vsel %vm454, %v702, %v704
        %709 = vst [vmem:[#allocation3 + $0x50] sm:$0xff] %v705
        %710 = vst [vmem:[#allocation3 + $0x58] sm:$0xff] %v706
        %v711 = vld [vmem:[#allocation2] sm:$0xff]
        %v712 = vld [vmem:[#allocation2 + $0x8] sm:$0xff]
        %v713 = vld [vmem:[#allocation2 + $0x10] sm:$0xff]
        %717 = vrot.lane.b32.xlu0 %v711, 1
        %v718 = vpop.permute.xlu0 %717
        %719 = vrot.lane.b32.xlu0 %v712, 1
        %v720 = vpop.permute.xlu0 %719
        %721 = vrot.lane.b32.xlu0 %v713, 1
        %v722 = vpop.permute.xlu0 %721
        %v723 = vsel %vm465, %v718, %v720
        %v724 = vsel %vm465, %v720, %v722
        %727 = vst [vmem:[#allocation3 + $0x60] sm:$0xff] %v723
        %728 = vst [vmem:[#allocation3 + $0x68] sm:$0xff] %v724
        %v729 = vld [vmem:[#allocation2 + $0x8] sm:$0xff]
        %v730 = vld [vmem:[#allocation2 + $0x10] sm:$0xff]
        %731 = vst [vmem:[#allocation3 + $0x70] sm:$0xff] %v729
        %732 = vst [vmem:[#allocation3 + $0x78] sm:$0xff] %v730
        %v733 = vld [vmem:[#allocation2 + $0x8] sm:$0xff]
        %v734 = vld [vmem:[#allocation2 + $0x10] sm:$0xff]
        %v735 = vld [vmem:[#allocation2 + $0x18] sm:$0xff]
        %739 = vrot.lane.b32.xlu0 %v733, 127
        %v740 = vpop.permute.xlu0 %739
        %741 = vrot.lane.b32.xlu0 %v734, 127
        %v742 = vpop.permute.xlu0 %741
        %743 = vrot.lane.b32.xlu0 %v735, 127
        %v744 = vpop.permute.xlu0 %743
        %v745 = vsel %vm481, %v740, %v742
        %v746 = vsel %vm481, %v742, %v744
        %749 = vst [vmem:[#allocation3 + $0x80] sm:$0xff] %v745
        %750 = vst [vmem:[#allocation3 + $0x88] sm:$0xff] %v746
        %v751 = vld [vmem:[#allocation2 + $0x8] sm:$0xff]
        %v752 = vld [vmem:[#allocation2 + $0x10] sm:$0xff]
        %v753 = vld [vmem:[#allocation2 + $0x18] sm:$0xff]
        %757 = vrot.lane.b32.xlu0 %v751, 126
        %v758 = vpop.permute.xlu0 %757
        %759 = vrot.lane.b32.xlu0 %v752, 126
        %v760 = vpop.permute.xlu0 %759
        %761 = vrot.lane.b32.xlu0 %v753, 126
        %v762 = vpop.permute.xlu0 %761
        %v763 = vsel %vm492, %v758, %v760
        %v764 = vsel %vm492, %v760, %v762
        %767 = vst [vmem:[#allocation3 + $0x90] sm:$0xff] %v763
        %768 = vst [vmem:[#allocation3 + $0x98] sm:$0xff] %v764
        %v769 = vld [vmem:[#allocation2 + $0x8] sm:$0xff]
        %v770 = vld [vmem:[#allocation2 + $0x10] sm:$0xff]
        %v771 = vld [vmem:[#allocation2 + $0x18] sm:$0xff]
        %775 = vrot.lane.b32.xlu0 %v769, 125
        %v776 = vpop.permute.xlu0 %775
        %777 = vrot.lane.b32.xlu0 %v770, 125
        %v778 = vpop.permute.xlu0 %777
        %779 = vrot.lane.b32.xlu0 %v771, 125
        %v780 = vpop.permute.xlu0 %779
        %v781 = vsel %vm503, %v776, %v778
        %v782 = vsel %vm503, %v778, %v780
        %785 = vst [vmem:[#allocation3 + $0xa0] sm:$0xff] %v781
        %786 = vst [vmem:[#allocation3 + $0xa8] sm:$0xff] %v782
        %v787 = vld [vmem:[#allocation2 + $0x8] sm:$0xff]
        %v788 = vld [vmem:[#allocation2 + $0x10] sm:$0xff]
        %v789 = vld [vmem:[#allocation2 + $0x18] sm:$0xff]
        %793 = vrot.lane.b32.xlu0 %v787, 124
        %v794 = vpop.permute.xlu0 %793
        %795 = vrot.lane.b32.xlu0 %v788, 124
        %v796 = vpop.permute.xlu0 %795
        %797 = vrot.lane.b32.xlu0 %v789, 124
        %v798 = vpop.permute.xlu0 %797
        %v799 = vsel %vm514, %v794, %v796
        %v800 = vsel %vm514, %v796, %v798
        %803 = vst [vmem:[#allocation3 + $0xb0] sm:$0xff] %v799
        %804 = vst [vmem:[#allocation3 + $0xb8] sm:$0xff] %v800
        %v805 = vld [vmem:[#allocation2 + $0x8] sm:$0xff]
        %v806 = vld [vmem:[#allocation2 + $0x10] sm:$0xff]
        %v807 = vld [vmem:[#allocation2 + $0x18] sm:$0xff]
        %811 = vrot.lane.b32.xlu0 %v805, 123
        %v812 = vpop.permute.xlu0 %811
        %813 = vrot.lane.b32.xlu0 %v806, 123
        %v814 = vpop.permute.xlu0 %813
        %815 = vrot.lane.b32.xlu0 %v807, 123
        %v816 = vpop.permute.xlu0 %815
        %v817 = vsel %vm525, %v812, %v814
        %v818 = vsel %vm525, %v814, %v816
        %821 = vst [vmem:[#allocation3 + $0xc0] sm:$0xff] %v817
        %822 = vst [vmem:[#allocation3 + $0xc8] sm:$0xff] %v818
        %v823 = vld [vmem:[#allocation2 + $0x8] sm:$0xff]
        %v824 = vld [vmem:[#allocation2 + $0x10] sm:$0xff]
        %v825 = vld [vmem:[#allocation2 + $0x18] sm:$0xff]
        %829 = vrot.lane.b32.xlu0 %v823, 122
        %v830 = vpop.permute.xlu0 %829
        %831 = vrot.lane.b32.xlu0 %v824, 122
        %v832 = vpop.permute.xlu0 %831
        %833 = vrot.lane.b32.xlu0 %v825, 122
        %v834 = vpop.permute.xlu0 %833
        %v835 = vsel %vm536, %v830, %v832
        %v836 = vsel %vm536, %v832, %v834
        %839 = vst [vmem:[#allocation3 + $0xd0] sm:$0xff] %v835
        %840 = vst [vmem:[#allocation3 + $0xd8] sm:$0xff] %v836
        %v841 = vld [vmem:[#allocation2 + $0x8] sm:$0xff]
        %v842 = vld [vmem:[#allocation2 + $0x10] sm:$0xff]
        %v843 = vld [vmem:[#allocation2 + $0x18] sm:$0xff]
        %847 = vrot.lane.b32.xlu0 %v841, 121
        %v848 = vpop.permute.xlu0 %847
        %849 = vrot.lane.b32.xlu0 %v842, 121
        %v850 = vpop.permute.xlu0 %849
        %851 = vrot.lane.b32.xlu0 %v843, 121
        %v852 = vpop.permute.xlu0 %851
        %v853 = vsel %vm547, %v848, %v850
        %v854 = vsel %vm547, %v850, %v852
        %857 = vst [vmem:[#allocation3 + $0xe0] sm:$0xff] %v853
        %858 = vst [vmem:[#allocation3 + $0xe8] sm:$0xff] %v854
        %s859 = scalar_lea.vmem [#allocation3], 240
        %860 = vst.msk [vmem:[%s859] ss:$8 sm:$0x3] %vm392, 1.0
        %861 = vst.msk [vmem:[%s859] ss:$8 sm:$0x0] %vm392, 1.0
        %v862 = vld [vmem:[%s356] sm:$0xf]
        %v863 = vld [vmem:[#allocation3] sm:$0xff]
        %v864 = vld [vmem:[#allocation3 + $0x8] sm:$0xff]
        %v865 = vld [vmem:[#allocation3 + $0x10] sm:$0xff]
        %v866 = vld [vmem:[#allocation3 + $0x18] sm:$0xff]
        %v867 = vld [vmem:[#allocation3 + $0x20] sm:$0xff]
        %v868 = vld [vmem:[#allocation3 + $0x28] sm:$0xff]
        %v869 = vld [vmem:[#allocation3 + $0x30] sm:$0xff]
        %v870 = vld [vmem:[#allocation3 + $0x38] sm:$0xff]
        %v871 = vld [vmem:[#allocation3 + $0x40] sm:$0xff]
        %v872 = vld [vmem:[#allocation3 + $0x48] sm:$0xff]
        %v873 = vld [vmem:[#allocation3 + $0x50] sm:$0xff]
        %v874 = vld [vmem:[#allocation3 + $0x58] sm:$0xff]
        %v875 = vld [vmem:[#allocation3 + $0x60] sm:$0xff]
        %v876 = vld [vmem:[#allocation3 + $0x68] sm:$0xff]
        %v877 = vld [vmem:[#allocation3 + $0x70] sm:$0xff]
        %v878 = vld [vmem:[#allocation3 + $0x78] sm:$0xff]
        %v879 = vld [vmem:[#allocation3 + $0x80] sm:$0xff]
        %v880 = vld [vmem:[#allocation3 + $0x88] sm:$0xff]
        %v881 = vld [vmem:[#allocation3 + $0x90] sm:$0xff]
        %v882 = vld [vmem:[#allocation3 + $0x98] sm:$0xff]
        %v883 = vld [vmem:[#allocation3 + $0xa0] sm:$0xff]
        %v884 = vld [vmem:[#allocation3 + $0xa8] sm:$0xff]
        %v885 = vld [vmem:[#allocation3 + $0xb0] sm:$0xff]
        %v886 = vld [vmem:[#allocation3 + $0xb8] sm:$0xff]
        %v887 = vld [vmem:[#allocation3 + $0xc0] sm:$0xff]
        %v888 = vld [vmem:[#allocation3 + $0xc8] sm:$0xff]
        %v889 = vld [vmem:[#allocation3 + $0xd0] sm:$0xff]
        %v890 = vld [vmem:[#allocation3 + $0xd8] sm:$0xff]
        %v891 = vld [vmem:[#allocation3 + $0xe0] sm:$0xff]
        %v892 = vld [vmem:[#allocation3 + $0xe8] sm:$0xff]
        %v893 = vld [vmem:[#allocation3 + $0xf0] sm:$0x1]
        %v894 = vld [vmem:[#allocation3 + $0xf8] sm:$0x1]
        %v895 = vpack.c.bf16 %v865, %v863
        %v896 = vpack.c.bf16 %v866, %v864
        %v897 = vpack.c.bf16 %v869, %v867
        %v898 = vpack.c.bf16 %v870, %v868
        %v899 = vpack.c.bf16 %v873, %v871
        %v900 = vpack.c.bf16 %v874, %v872
        %v901 = vpack.c.bf16 %v877, %v875
        %v902 = vpack.c.bf16 %v878, %v876
        %v903 = vpack.c.bf16 %v881, %v879
        %v904 = vpack.c.bf16 %v882, %v880
        %v905 = vpack.c.bf16 %v885, %v883
        %v906 = vpack.c.bf16 %v886, %v884
        %v907 = vpack.c.bf16 %v889, %v887
        %v908 = vpack.c.bf16 %v890, %v888
        %v909 = vpack.c.bf16 %v893, %v891
        %v910 = vpack.c.bf16 %v894, %v892
        %v912 = vsel %vm547, %v862, 0
        %vm914 = vcmask 1043456
        %vm915 = vcmask 1044480
        %v916 = vsel %vm914, 4294967295, 65535
        %v917 = vsel %vm915, %v916, 0
        %v919 = vand.u32 %v909, %v917
        %v922 = vand.u32 %v910, %v917
        %924 = vmatpush.bf16.msra.mxu0 %v919
        %925 = vmatpush.bf16.msra.mxu0 %v907
        %926 = vmatpush.bf16.msra.mxu0 %v905
        %927 = vmatpush.bf16.msra.mxu0 %v903
        %928 = vmatpush.bf16.msra.mxu0 %v901
        %929 = vmatpush.bf16.msra.mxu0 %v899
        %930 = vmatpush.bf16.msra.mxu0 %v897
        %931 = vmatpush.bf16.msra.mxu0 %v895
        %932 = vmatmul.bf16.gmra.mxu0 %v912
        %v933 = vpop.f32.mrf.mxu0
        %v934 = vadd.f32 0.0, %v933
        %v935 = vpop.f32.mrf.mxu0
        %936 = vdwg.mxu0
        %937 = vmatpush.bf16.msra.mxu0 %v922
        %938 = vmatpush.bf16.msra.mxu0 %v908
        %939 = vmatpush.bf16.msra.mxu0 %v906
        %940 = vmatpush.bf16.msra.mxu0 %v904
        %941 = vmatpush.bf16.msra.mxu0 %v902
        %942 = vmatpush.bf16.msra.mxu0 %v900
        %943 = vmatpush.bf16.msra.mxu0 %v898
        %944 = vmatpush.bf16.msra.mxu0 %v896
        %945 = vmatmul.bf16.gmra.mxu0 %v912
        %v946 = vpop.f32.mrf.mxu0
        %v947 = vadd.f32 0.0, %v946
        %v948 = vpop.f32.mrf.mxu0
        %949 = vdwg.mxu0
        %vm950 = vcmp.ge.f32.partialorder %v934, 0.0
        %vm951 = vcmp.ge.f32.partialorder %v947, 0.0
        %v952 = vmul.f32 %v934, 0.1
        %v953 = vmul.f32 %v947, 0.1
        %v954 = vsel %vm950, %v934, %v952
        %v955 = vsel %vm951, %v947, %v953
        %956 = vst [vmem:[%s374] sm:$0xff] %v954
        %957 = vst [vmem:[%s374 + $0x8] sm:$0xff] %v955
        %958 = vst [vmem:[#allocation2 + $0x8] sm:$0xff] %v954
        %959 = vst [vmem:[#allocation2 + $0x10] sm:$0xff] %v955
        %v960 = vld [vmem:[#allocation2] sm:$0xff]
        %v961 = vld [vmem:[#allocation2 + $0x8] sm:$0xff]
        %v962 = vld [vmem:[#allocation2 + $0x10] sm:$0xff]
        %966 = vrot.lane.b32.xlu0 %v960, 1
        %v967 = vpop.permute.xlu0 %966
        %968 = vrot.lane.b32.xlu0 %v961, 1
        %v969 = vpop.permute.xlu0 %968
        %970 = vrot.lane.b32.xlu0 %v962, 1
        %v971 = vpop.permute.xlu0 %970
        %v972 = vsel %vm465, %v967, %v969
        %v973 = vsel %vm465, %v969, %v971
        %976 = vst [vmem:[#allocation3] sm:$0xff] %v972
        %977 = vst [vmem:[#allocation3 + $0x8] sm:$0xff] %v973
        %v978 = vld [vmem:[#allocation2 + $0x8] sm:$0xff]
        %v979 = vld [vmem:[#allocation2 + $0x10] sm:$0xff]
        %980 = vst [vmem:[#allocation3 + $0x10] sm:$0xff] %v978
        %981 = vst [vmem:[#allocation3 + $0x18] sm:$0xff] %v979
        %v982 = vld [vmem:[#allocation2 + $0x8] sm:$0xff]
        %v983 = vld [vmem:[#allocation2 + $0x10] sm:$0xff]
        %v984 = vld [vmem:[#allocation2 + $0x18] sm:$0xff]
        %988 = vrot.lane.b32.xlu0 %v982, 127
        %v989 = vpop.permute.xlu0 %988
        %990 = vrot.lane.b32.xlu0 %v983, 127
        %v991 = vpop.permute.xlu0 %990
        %992 = vrot.lane.b32.xlu0 %v984, 127
        %v993 = vpop.permute.xlu0 %992
        %v994 = vsel %vm481, %v989, %v991
        %v995 = vsel %vm481, %v991, %v993
        %998 = vst [vmem:[#allocation3 + $0x20] sm:$0xff] %v994
        %999 = vst [vmem:[#allocation3 + $0x28] sm:$0xff] %v995
        %s1000 = scalar_lea.vmem [#allocation3], 48
        %1001 = vst.msk [vmem:[%s1000] ss:$8 sm:$0x3] %vm392, 1.0
        %1002 = vst.msk [vmem:[%s1000] ss:$8 sm:$0x0] %vm392, 1.0
        %v1003 = vld [vmem:[%s283] sm:$0x1]
        %v1004 = vld [vmem:[#allocation3] sm:$0xff]
        %v1005 = vld [vmem:[#allocation3 + $0x8] sm:$0xff]
        %v1006 = vld [vmem:[#allocation3 + $0x10] sm:$0xff]
        %v1007 = vld [vmem:[#allocation3 + $0x18] sm:$0xff]
        %v1008 = vld [vmem:[#allocation3 + $0x20] sm:$0xff]
        %v1009 = vld [vmem:[#allocation3 + $0x28] sm:$0xff]
        %v1010 = vld [vmem:[#allocation3 + $0x30] sm:$0x1]
        %v1011 = vld [vmem:[#allocation3 + $0x38] sm:$0x1]
        %v1012 = vpack.c.bf16 %v1006, %v1004
        %v1013 = vpack.c.bf16 %v1007, %v1005
        %v1014 = vpack.c.bf16 %v1010, %v1008
        %v1015 = vpack.c.bf16 %v1011, %v1009
        %vm1016 = vcmask 203776
        %v1018 = vsel %vm1016, %v1003, 0
        %v1021 = vand.u32 %v1014, %v917
        %v1024 = vand.u32 %v1015, %v917
        %1026 = vmatpush.bf16.msra.mxu0 0
        %1027 = vmatpush.bf16.msra.mxu0 0
        %1028 = vmatpush.bf16.msra.mxu0 0
        %1029 = vmatpush.bf16.msra.mxu0 0
        %1030 = vmatpush.bf16.msra.mxu0 0
        %1031 = vmatpush.bf16.msra.mxu0 0
        %1032 = vmatpush.bf16.msra.mxu0 %v1021
        %1033 = vmatpush.bf16.msra.mxu0 %v1012
        %1034 = vmatmul.bf16.gmra.mxu0 %v1018
        %v1035 = vpop.f32.mrf.mxu0
        %v1036 = vadd.f32 0.0, %v1035
        %v1037 = vpop.f32.mrf.mxu0
        %1038 = vdwg.mxu0
        %1039 = vmatpush.bf16.msra.mxu0 0
        %1040 = vmatpush.bf16.msra.mxu0 0
        %1041 = vmatpush.bf16.msra.mxu0 0
        %1042 = vmatpush.bf16.msra.mxu0 0
        %1043 = vmatpush.bf16.msra.mxu0 0
        %1044 = vmatpush.bf16.msra.mxu0 0
        %1045 = vmatpush.bf16.msra.mxu0 %v1024
        %1046 = vmatpush.bf16.msra.mxu0 %v1013
        %1047 = vmatmul.bf16.gmra.mxu0 %v1018
        %v1048 = vpop.f32.mrf.mxu0
        %v1049 = vadd.f32 0.0, %v1048
        %v1050 = vpop.f32.mrf.mxu0
        %1051 = vdwg.mxu0
        %v1054 = vrot.slane %v1049, 7
        %vm1055 = vcmask 1040384
        %v1056 = vsel %vm1055, %v1036, %v1054
        %1058 = vst.msk [vmem:[%s382] sm:$0x3] %vm392, %v1056
        %p1059 = scmp.lt.s32.totalorder %s25, 1
        %s1060 = scalar_select %p1059, %s25, 1
        %p1061 = scmp.lt.s32.totalorder %s26, 3
        %s1062 = scalar_select %p1061, %s26, 3
        %s1063 = smul.addr %s1062, 2
        %s1064 = smul.addr %s1060, 8
        %s1065 = sadd.s32 %s1063, %s1064
        %s1066 = smul.addr %s1065, 8
        %s1067 = scalar_lea.vmem %s4, %s1066
        %p1068 = scmp.lt.s32.totalorder %s25, 1
        %s1069 = scalar_select %p1068, %s25, 1
        %p1070 = scmp.lt.s32.totalorder %s26, 3
        %s1071 = scalar_select %p1070, %s26, 3
        %s1072 = smul.addr %s1071, 2
        %s1073 = smul.addr %s1069, 8
        %s1074 = sadd.s32 %s1072, %s1073
        %s1075 = smul.addr %s1074, 8
        %s1076 = scalar_lea.vmem %s5, %s1075
        %p1077 = scmp.lt.s32.totalorder %s25, 1
        %s1078 = scalar_select %p1077, %s25, 1
        %p1079 = scmp.lt.s32.totalorder %s26, 3
        %s1080 = scalar_select %p1079, %s26, 3
        %s1081 = smul.addr %s1080, 2
        %s1082 = smul.addr %s1078, 8
        %s1083 = sadd.s32 %s1081, %s1082
        %s1084 = scalar_lea.vmem %s6, %s1083
        // Predicated region
        $region41: #{_lambda_.1} parent=35 // pred_check
          %p1085 = pneg %p157
        $region42: #{_lambda_.1} parent=35 // pred_check_branch
          %1087 = sbr.rel (%p1085) target = $region44
        $region43: #{_lambda_.1} parent=35 // pred_region
          _
        $region44: #{_lambda_.1} parent=35 // pred_fallthru
          _
        // Predicated region
        $region45: #{_lambda_.1} parent=35 // pred_check
          %p1088 = pneg %p185
        $region46: #{_lambda_.1} parent=35 // pred_check_branch
          %1090 = sbr.rel (%p1088) target = $region48
        $region47: #{_lambda_.1} parent=35 // pred_region
          _
        $region48: #{_lambda_.1} parent=35 // pred_fallthru
          _
        // Predicated region
        $region49: #{_lambda_.1} parent=35 // pred_check
          %p1091 = pneg %p213
        $region50: #{_lambda_.1} parent=35 // pred_check_branch
          %1093 = sbr.rel (%p1091) target = $region52
        $region51: #{_lambda_.1} parent=35 // pred_region
          _
        $region52: #{_lambda_.1} parent=35 // pred_fallthru
          _
      $region36: #{_lambda_.1} parent=5 // pred_fallthru
        _
      %p1094 = scmp.le.s32.totalorder 2, %s16
      // Predicated region
      $region53: #{_lambda_.1} parent=5 // pred_check
        %p1095 = pneg %p1094
      $region54: #{_lambda_.1} parent=5 // pred_check_branch
        %1097 = sbr.rel (%p1095) target = $region56
      $region55: #{_lambda_.1} parent=5 // pred_region
        %s1098 = ssub.s32 %s16, 2
        // Predicated region
        $region57: #{_lambda_.1} parent=55 // pred_check
          %p1099 = pneg %p163
        $region58: #{_lambda_.1} parent=55 // pred_check_branch
          %1101 = sbr.rel (%p1099) target = $region60
        $region59: #{_lambda_.1} parent=55 // pred_region
          %p1102 = scmp.lt.s32.totalorder %s27, 1
          %s1103 = scalar_select %p1102, %s27, 1
          %p1104 = scmp.lt.s32.totalorder %s28, 3
          %s1105 = scalar_select %p1104, %s28, 3
          %s1106 = smul.addr %s1105, 2
          %s1107 = smul.addr %s1103, 8
          %s1108 = sadd.s32 %s1106, %s1107
          %s1109 = smul.addr %s1108, 8
          %s1110 = scalar_lea.vmem %s4, %s1109
        $region60: #{_lambda_.1} parent=55 // pred_fallthru
          _
        // Predicated region
        $region61: #{_lambda_.1} parent=55 // pred_check
          %p1111 = pneg %p191
        $region62: #{_lambda_.1} parent=55 // pred_check_branch
          %1113 = sbr.rel (%p1111) target = $region64
        $region63: #{_lambda_.1} parent=55 // pred_region
          %p1114 = scmp.lt.s32.totalorder %s27, 1
          %s1115 = scalar_select %p1114, %s27, 1
          %p1116 = scmp.lt.s32.totalorder %s28, 3
          %s1117 = scalar_select %p1116, %s28, 3
          %s1118 = smul.addr %s1117, 2
          %s1119 = smul.addr %s1115, 8
          %s1120 = sadd.s32 %s1118, %s1119
          %s1121 = smul.addr %s1120, 8
          %s1122 = scalar_lea.vmem %s5, %s1121
        $region64: #{_lambda_.1} parent=55 // pred_fallthru
          _
        // Predicated region
        $region65: #{_lambda_.1} parent=55 // pred_check
          %p1123 = pneg %p219
        $region66: #{_lambda_.1} parent=55 // pred_check_branch
          %1125 = sbr.rel (%p1123) target = $region68
        $region67: #{_lambda_.1} parent=55 // pred_region
          %p1126 = scmp.lt.s32.totalorder %s27, 1
          %s1127 = scalar_select %p1126, %s27, 1
          %p1128 = scmp.lt.s32.totalorder %s28, 3
          %s1129 = scalar_select %p1128, %s28, 3
          %s1130 = smul.addr %s1129, 2
          %s1131 = smul.addr %s1127, 8
          %s1132 = sadd.s32 %s1130, %s1131
          %s1133 = scalar_lea.vmem %s6, %s1132
        $region68: #{_lambda_.1} parent=55 // pred_fallthru
          _
      $region56: #{_lambda_.1} parent=5 // pred_fallthru
        _
    $region6: #{_lambda_.1} parent=1 // loop_footer
      %s20 = sadd.s32 1, %s16
    $region7: #{_lambda_.1} parent=1 // loop_footer_branch
      %15 = sbr.rel target = $region3
    $region8: #{_lambda_.1} parent=1 // loop_exit
      _
    %1134 = vsyncpa [#allocation5], 1
    %s1135 = scalar_lea.sflag [#allocation5], 1
    %1136 = vsyncpa %s1135, 1

</llo_original>
